<compile_context>
chip_gen: v5e
topology: v5e:2x2
jax: 0.10.0
libtpu: 0.0.40
codegen_flags: <defaults>
</compile_context>

<pallas_src>
import jax
import jax.numpy as jnp
import numpy as np
from jax.experimental import pallas as pl
from jax.experimental.pallas import tpu as pltpu


def _choose_imgs_per_step(B, L, target_lanes=512):
    """Images packed per grid step: smallest divisor of B giving >= target
    lanes of spatial work per step (amortizes per-step overhead, widens the
    stores).  For real batches (B >= 4) this leaves >= 2 grid steps so v7x's
    two TensorCores both stay loaded."""
    best = 1
    for d in range(1, B + 1):
        if B % d:
            continue
        best = d
        if d * L >= target_lanes:
            break
    return best


def _make_kernel(H, W, C, Cp, imgs, mm_dtype):
    """Per-grid-step kernel on an (imgs, C, H*W) lane-dense block."""
    L = H * W
    taps = [(dy, dx) for dy in (-1, 0, 1) for dx in (-1, 0, 1)]

    def kernel(x_ref, w1_ref, b1_ref, w2_ref, b2_ref, w3_ref, b3_ref, o_ref):
        # ---- tap validity masks: computed ONCE per grid step (hoisted out of
        # the per-image loop).  W is a power of two at LightZero shapes, so
        # use shift/and instead of div/mod on the VPU.
        idx = jax.lax.broadcasted_iota(jnp.int32, (1, L), 1)
        if (W & (W - 1)) == 0:
            col = idx & (W - 1)
            row = idx >> (W.bit_length() - 1)
        else:
            col = idx % W
            row = idx // W

        def tap_mask(dy, dx):
            m = None
            if dy == -1:
                m = row >= 1                  # sampling row h-1 is valid
            elif dy == 1:
                m = row <= H - 2              # sampling row h+1 is valid
            if dx == -1:
                c = col >= 1                  # sampling col w-1 is valid
            elif dx == 1:
                c = col <= W - 2              # sampling col w+1 is valid
            else:
                c = None
            if c is not None:
                m = c if m is None else jnp.logical_and(m, c)
            return m.astype(jnp.float32)      # (1, L), broadcast over sublanes

        masks = {t: tap_mask(dy, dx) for t, (dy, dx) in enumerate(taps)
                 if (dy, dx) != (0, 0)}

        w1 = w1_ref[...]
        b1 = b1_ref[...]
        b2 = b2_ref[...]
        w3 = w3_ref[...]
        b3 = b3_ref[...]

        for i in range(imgs):
            x = x_ref[i]                                        # (C, L) f32

            # conv1 (1x1, BN folded) + ReLU: one MXU matmul, N = L lanes.
            y1 = jnp.dot(w1, x.astype(mm_dtype),
                         preferred_element_type=jnp.float32)
            y1 = jnp.maximum(y1 + b1, 0.0)                      # (Cp, L)

            # conv2 (3x3, pad=1, BN folded) + ReLU: 9 accumulating K=Cp
            # matmuls; each tap = in-register XLU lane rotate + validity mask.
            # No zero-padded VMEM copy, no unaligned lane slices, no
            # (9*Cp, L) patch matrix in the vreg file.
            y2 = jnp.dot(w2_ref[4], y1.astype(mm_dtype),        # center tap
                         preferred_element_type=jnp.float32)
            for t, (dy, dx) in enumerate(taps):
                if (dy, dx) == (0, 0):
                    continue
                s = dy * W + dx                                 # flattened shift
                tap = pltpu.roll(y1, (-s) % L, 1)               # tap[l] = y1[l+s]
                tap = tap * masks[t]                            # kill row/col wrap
                y2 = y2 + jnp.dot(w2_ref[t], tap.astype(mm_dtype),
                                  preferred_element_type=jnp.float32)
            y2 = jnp.maximum(y2 + b2, 0.0)                      # (Cp, L)

            # conv3 (1x1, BN folded), no activation.
            y3 = jnp.dot(w3, y2.astype(mm_dtype),
                         preferred_element_type=jnp.float32) + b3   # (C, L)

            # residual + ReLU, sigmoid gate (single EUP tanh), gated product.
            res = jnp.maximum(y3 + x, 0.0)
            att = 0.5 + 0.5 * jnp.tanh(0.5 * res)               # == sigmoid(res)
            o_ref[i] = (x * att).astype(o_ref.dtype)

    return kernel


def _prep_params(params, C, Cp, mm_dtype):
    """BN-folded (Cin,Cout)/HWIO weights -> kernel layouts.
    Out-channels of conv1/conv2 and in-channels of conv2/conv3 are zero-padded
    to Cp (sublane multiple); conv1 keeps K=C so it consumes x directly and
    conv3 keeps M=C so the result matches the unpadded output block."""
    w1, b1, w2, b2, w3, b3 = params
    dc = Cp - C

    w1k = jnp.pad(w1.T, ((0, dc), (0, 0))).astype(mm_dtype)          # (Cp, C)
    b1k = jnp.pad(b1[0], (0, dc)).reshape(Cp, 1).astype(jnp.float32)

    # HWIO (3,3,Cin,Cout) -> (tap, Cout, Cin), tap = kh*3 + kw (matches the
    # dy/dx enumeration order in the kernel).
    w2t = jnp.transpose(w2, (0, 1, 3, 2)).reshape(9, C, C)
    w2k = jnp.pad(w2t, ((0, 0), (0, dc), (0, dc))).astype(mm_dtype)  # (9,Cp,Cp)
    b2k = jnp.pad(b2[0], (0, dc)).reshape(Cp, 1).astype(jnp.float32)

    w3k = jnp.pad(w3.T, ((0, 0), (0, dc))).astype(mm_dtype)          # (C, Cp)
    b3k = b3[0].reshape(C, 1).astype(jnp.float32)

    return w1k, b1k, w2k, b2k, w3k, b3k


def spatial_attention(x_nchw, params):
    """x_nchw: (B, C, H, W) float32.  Returns x * sigmoid(ResBlock(x))."""
    B, C, H, W = x_nchw.shape
    L = H * W
    Cp = ((C + 7) // 8) * 8
    # bf16 MXU operands (f32 accumulation) only at real widths (v6e/v7x MXU is
    # bf16-native); elementwise math always stays f32.  Toy shape stays f32.
    mm_dtype = jnp.bfloat16 if C >= 64 else jnp.float32

    imgs = _choose_imgs_per_step(B, L)
    grid = (B // imgs,)

    # Free layout change: NCHW is already channel-major / spatial-minor, so
    # this is a metadata reshape -- no HBM pad / transpose / slice passes.
    x = x_nchw.reshape(B, C, L)

    w1k, b1k, w2k, b2k, w3k, b3k = _prep_params(params, C, Cp, mm_dtype)
    kernel = _make_kernel(H, W, C, Cp, imgs, mm_dtype)

    out = pl.pallas_call(
        kernel,
        out_shape=jax.ShapeDtypeStruct((B, C, L), x_nchw.dtype),
        grid=grid,
        in_specs=[
            pl.BlockSpec((imgs, C, L), lambda b: (b, 0, 0)),   # x (imgs images)
            pl.BlockSpec((Cp, C), lambda b: (0, 0)),           # w1 (out, in)
            pl.BlockSpec((Cp, 1), lambda b: (0, 0)),           # b1
            pl.BlockSpec((9, Cp, Cp), lambda b: (0, 0, 0)),    # w2 taps (t,out,in)
            pl.BlockSpec((Cp, 1), lambda b: (0, 0)),           # b2
            pl.BlockSpec((C, Cp), lambda b: (0, 0)),           # w3 (out, in)
            pl.BlockSpec((C, 1), lambda b: (0, 0)),            # b3
        ],
        out_specs=pl.BlockSpec((imgs, C, L), lambda b: (b, 0, 0)),
        compiler_params=pltpu.CompilerParams(
            # v7x: both TCs split the batch steps; v5e/v6e: sequential loop.
            dimension_semantics=("parallel",),
            # Toy footprint is a few KiB/step; at real LightZero widths
            # re-budget the per-step block against v7x's 64 MiB physical VMEM.
            vmem_limit_bytes=32 * 1024 * 1024,
        ),
    )(x, w1k, b1k, w2k, b2k, w3k, b3k)

    return out.reshape(B, C, H, W)


def init_params(key, C):
    """Deterministic conv weights + inference BatchNorm, folded into (W, b)."""
    ks = jax.random.split(key, 15)
    eps = 1e-5

    def bn_fold(k0, k1, k2, k3):
        gamma = jax.random.uniform(k0, (C,), jnp.float32, 0.5, 1.5)
        beta = 0.1 * jax.random.normal(k1, (C,), jnp.float32)
        mean = 0.1 * jax.random.normal(k2, (C,), jnp.float32)
        var = jax.random.uniform(k3, (C,), jnp.float32, 0.5, 1.5)
        scale = gamma / jnp.sqrt(var + eps)
        shift = beta - mean * scale
        return scale, shift

    # Conv weights (bias=False in the module).
    w1 = 0.4 * jax.random.normal(ks[0], (C, C), jnp.float32)        # 1x1: (Cin, Cout)
    w2 = 0.2 * jax.random.normal(ks[1], (3, 3, C, C), jnp.float32)  # 3x3: HWIO
    w3 = 0.4 * jax.random.normal(ks[2], (C, C), jnp.float32)        # 1x1: (Cin, Cout)

    s1, t1 = bn_fold(*ks[3:7])
    s2, t2 = bn_fold(*ks[7:11])
    s3, t3 = bn_fold(*ks[11:15])

    w1f = w1 * s1[None, :]
    w2f = w2 * s2[None, None, None, :]
    w3f = w3 * s3[None, :]
    return (w1f, t1[None, :], w2f, t2[None, :], w3f, t3[None, :])


def reference(x_nchw, params):
    """Pure-JAX reference of the same (BN-folded) forward pass."""
    w1, b1, w2, b2, w3, b3 = params
    x = jnp.transpose(x_nchw, (0, 2, 3, 1)).astype(jnp.float32)

    def conv(y, w_hwio):
        return jax.lax.conv_general_dilated(
            y, w_hwio, window_strides=(1, 1), padding="SAME",
            dimension_numbers=("NHWC", "HWIO", "NHWC"))

    y1 = jax.nn.relu(conv(x, w1[None, None]) + b1[0])
    y2 = jax.nn.relu(conv(y1, w2) + b2[0])
    y3 = conv(y2, w3[None, None]) + b3[0]
    att = jax.nn.sigmoid(jax.nn.relu(y3 + x))
    out = x * att
    return jnp.transpose(out, (0, 3, 1, 2))


if __name__ == "__main__":
    B, C, H, W = 2, 4, 16, 16
    key = jax.random.PRNGKey(0)
    kx, kp = jax.random.split(key)
    x = jax.random.normal(kx, (B, C, H, W), jnp.float32)
    params = init_params(kp, C)

    out = spatial_attention(x, params)
    out = jax.block_until_ready(out)

    ref = jax.block_until_ready(reference(x, params))
    np.testing.assert_allclose(np.asarray(out), np.asarray(ref),
                               rtol=1e-4, atol=1e-4)
    print("KERNEL_OK")
</pallas_src>

<mosaic_0001>
module attributes {stable_mosaic.version = 11 : i64} {
  func.func @kernel(%arg0: i32, %arg1: memref<2x4x256xf32, #tpu.memory_space<vmem>>, %arg2: memref<8x4xf32, #tpu.memory_space<vmem>>, %arg3: memref<8x1xf32, #tpu.memory_space<vmem>>, %arg4: memref<9x8x8xf32, #tpu.memory_space<vmem>>, %arg5: memref<8x1xf32, #tpu.memory_space<vmem>>, %arg6: memref<4x8xf32, #tpu.memory_space<vmem>>, %arg7: memref<4x1xf32, #tpu.memory_space<vmem>>, %arg8: memref<2x4x256xf32, #tpu.memory_space<vmem>>) attributes {dimension_semantics = [#tpu.dimension_semantics<parallel>], iteration_bounds = array<i64: 1>, scalar_prefetch = 0 : i64, scratch_operands = 0 : i64, tpu.core_type = #tpu.core_type<tc>, window_params = [{transform_indices = @transform_0, window_bounds = array<i64: 2, 4, 256>}, {pipeline_mode = #tpu.pipeline_mode<synchronous>, transform_indices = @transform_1, window_bounds = array<i64: 8, 4>}, {pipeline_mode = #tpu.pipeline_mode<synchronous>, transform_indices = @transform_2, window_bounds = array<i64: 8, 1>}, {pipeline_mode = #tpu.pipeline_mode<synchronous>, transform_indices = @transform_3, window_bounds = array<i64: 9, 8, 8>}, {pipeline_mode = #tpu.pipeline_mode<synchronous>, transform_indices = @transform_4, window_bounds = array<i64: 8, 1>}, {pipeline_mode = #tpu.pipeline_mode<synchronous>, transform_indices = @transform_5, window_bounds = array<i64: 4, 8>}, {pipeline_mode = #tpu.pipeline_mode<synchronous>, transform_indices = @transform_6, window_bounds = array<i64: 4, 1>}, {transform_indices = @transform_7, window_bounds = array<i64: 2, 4, 256>}]} {
    %0 = tpu.iota {dimensions = array<i32: 1>} : vector<1x256xi32>
    %c15_i32 = arith.constant 15 : i32
    %1 = vector.broadcast %c15_i32 : i32 to vector<1x256xi32>
    %2 = arith.andi %0, %1 : vector<1x256xi32>
    %c4_i32 = arith.constant 4 : i32
    %3 = vector.broadcast %c4_i32 : i32 to vector<1x256xi32>
    %4 = arith.shrsi %0, %3 : vector<1x256xi32>
    %c1_i32 = arith.constant 1 : i32
    %5 = vector.broadcast %c1_i32 : i32 to vector<1x256xi32>
    %6 = arith.cmpi sge, %4, %5 : vector<1x256xi32>
    %c1_i32_0 = arith.constant 1 : i32
    %7 = vector.broadcast %c1_i32_0 : i32 to vector<1x256xi32>
    %8 = arith.cmpi sge, %2, %7 : vector<1x256xi32>
    %9 = arith.andi %6, %8 : vector<1x256xi1>
    %10 = arith.extui %9 : vector<1x256xi1> to vector<1x256xi32>
    %11 = arith.sitofp %10 : vector<1x256xi32> to vector<1x256xf32>
    %c1_i32_1 = arith.constant 1 : i32
    %12 = vector.broadcast %c1_i32_1 : i32 to vector<1x256xi32>
    %13 = arith.cmpi sge, %4, %12 : vector<1x256xi32>
    %14 = arith.extui %13 : vector<1x256xi1> to vector<1x256xi32>
    %15 = arith.sitofp %14 : vector<1x256xi32> to vector<1x256xf32>
    %c1_i32_2 = arith.constant 1 : i32
    %16 = vector.broadcast %c1_i32_2 : i32 to vector<1x256xi32>
    %17 = arith.cmpi sge, %4, %16 : vector<1x256xi32>
    %c14_i32 = arith.constant 14 : i32
    %18 = vector.broadcast %c14_i32 : i32 to vector<1x256xi32>
    %19 = arith.cmpi sle, %2, %18 : vector<1x256xi32>
    %20 = arith.andi %17, %19 : vector<1x256xi1>
    %21 = arith.extui %20 : vector<1x256xi1> to vector<1x256xi32>
    %22 = arith.sitofp %21 : vector<1x256xi32> to vector<1x256xf32>
    %c1_i32_3 = arith.constant 1 : i32
    %23 = vector.broadcast %c1_i32_3 : i32 to vector<1x256xi32>
    %24 = arith.cmpi sge, %2, %23 : vector<1x256xi32>
    %25 = arith.extui %24 : vector<1x256xi1> to vector<1x256xi32>
    %26 = arith.sitofp %25 : vector<1x256xi32> to vector<1x256xf32>
    %c14_i32_4 = arith.constant 14 : i32
    %27 = vector.broadcast %c14_i32_4 : i32 to vector<1x256xi32>
    %28 = arith.cmpi sle, %2, %27 : vector<1x256xi32>
    %29 = arith.extui %28 : vector<1x256xi1> to vector<1x256xi32>
    %30 = arith.sitofp %29 : vector<1x256xi32> to vector<1x256xf32>
    %c14_i32_5 = arith.constant 14 : i32
    %31 = vector.broadcast %c14_i32_5 : i32 to vector<1x256xi32>
    %32 = arith.cmpi sle, %4, %31 : vector<1x256xi32>
    %c1_i32_6 = arith.constant 1 : i32
    %33 = vector.broadcast %c1_i32_6 : i32 to vector<1x256xi32>
    %34 = arith.cmpi sge, %2, %33 : vector<1x256xi32>
    %35 = arith.andi %32, %34 : vector<1x256xi1>
    %36 = arith.extui %35 : vector<1x256xi1> to vector<1x256xi32>
    %37 = arith.sitofp %36 : vector<1x256xi32> to vector<1x256xf32>
    %c14_i32_7 = arith.constant 14 : i32
    %38 = vector.broadcast %c14_i32_7 : i32 to vector<1x256xi32>
    %39 = arith.cmpi sle, %4, %38 : vector<1x256xi32>
    %40 = arith.extui %39 : vector<1x256xi1> to vector<1x256xi32>
    %41 = arith.sitofp %40 : vector<1x256xi32> to vector<1x256xf32>
    %c14_i32_8 = arith.constant 14 : i32
    %42 = vector.broadcast %c14_i32_8 : i32 to vector<1x256xi32>
    %43 = arith.cmpi sle, %4, %42 : vector<1x256xi32>
    %c14_i32_9 = arith.constant 14 : i32
    %44 = vector.broadcast %c14_i32_9 : i32 to vector<1x256xi32>
    %45 = arith.cmpi sle, %2, %44 : vector<1x256xi32>
    %46 = arith.andi %43, %45 : vector<1x256xi1>
    %47 = arith.extui %46 : vector<1x256xi1> to vector<1x256xi32>
    %48 = arith.sitofp %47 : vector<1x256xi32> to vector<1x256xf32>
    %c0 = arith.constant 0 : index
    %c0_10 = arith.constant 0 : index
    %49 = vector.load %arg2[%c0, %c0_10] : memref<8x4xf32, #tpu.memory_space<vmem>>, vector<8x4xf32>
    %c0_11 = arith.constant 0 : index
    %c0_12 = arith.constant 0 : index
    %50 = vector.load %arg3[%c0_11, %c0_12] : memref<8x1xf32, #tpu.memory_space<vmem>>, vector<8x1xf32>
    %c0_13 = arith.constant 0 : index
    %c0_14 = arith.constant 0 : index
    %51 = vector.load %arg5[%c0_13, %c0_14] : memref<8x1xf32, #tpu.memory_space<vmem>>, vector<8x1xf32>
    %c0_15 = arith.constant 0 : index
    %c0_16 = arith.constant 0 : index
    %52 = vector.load %arg6[%c0_15, %c0_16] : memref<4x8xf32, #tpu.memory_space<vmem>>, vector<4x8xf32>
    %c0_17 = arith.constant 0 : index
    %c0_18 = arith.constant 0 : index
    %53 = vector.load %arg7[%c0_17, %c0_18] : memref<4x1xf32, #tpu.memory_space<vmem>>, vector<4x1xf32>
    %c0_19 = arith.constant 0 : index
    %c0_20 = arith.constant 0 : index
    %c0_21 = arith.constant 0 : index
    %54 = vector.load %arg1[%c0_19, %c0_20, %c0_21] : memref<2x4x256xf32, #tpu.memory_space<vmem>>, vector<1x4x256xf32>
    %55 = vector.shape_cast %54 : vector<1x4x256xf32> to vector<4x256xf32>
    %cst = arith.constant dense<0.000000e+00> : vector<8x256xf32>
    %56 = tpu.matmul %49, %55, %cst {dimension_numbers = #tpu.dot_dimension_numbers<[1], [0], [0], [1], [0, 0, 1, 1], [], []>} : vector<8x4xf32>, vector<4x256xf32>, vector<8x256xf32> -> vector<8x256xf32>
    %57 = vector.broadcast %50 : vector<8x1xf32> to vector<8x256xf32>
    %58 = arith.addf %56, %57 : vector<8x256xf32>
    %cst_22 = arith.constant 0.000000e+00 : f32
    %59 = vector.broadcast %cst_22 : f32 to vector<8x256xf32>
    %60 = arith.maximumf %58, %59 : vector<8x256xf32>
    %c4 = arith.constant 4 : index
    %c0_23 = arith.constant 0 : index
    %c0_24 = arith.constant 0 : index
    %61 = vector.load %arg4[%c4, %c0_23, %c0_24] : memref<9x8x8xf32, #tpu.memory_space<vmem>>, vector<1x8x8xf32>
    %62 = vector.shape_cast %61 : vector<1x8x8xf32> to vector<8x8xf32>
    %cst_25 = arith.constant dense<0.000000e+00> : vector<8x256xf32>
    %63 = tpu.matmul %62, %60, %cst_25 {dimension_numbers = #tpu.dot_dimension_numbers<[1], [0], [0], [1], [0, 0, 1, 1], [], []>} : vector<8x8xf32>, vector<8x256xf32>, vector<8x256xf32> -> vector<8x256xf32>
    %c17_i32 = arith.constant 17 : i32
    %64 = tpu.dynamic_rotate %60 by %c17_i32 dim 1 : vector<8x256xf32>, i32 -> vector<8x256xf32>
    %65 = vector.broadcast %11 : vector<1x256xf32> to vector<8x256xf32>
    %66 = arith.mulf %64, %65 : vector<8x256xf32>
    %c0_26 = arith.constant 0 : index
    %c0_27 = arith.constant 0 : index
    %c0_28 = arith.constant 0 : index
    %67 = vector.load %arg4[%c0_26, %c0_27, %c0_28] : memref<9x8x8xf32, #tpu.memory_space<vmem>>, vector<1x8x8xf32>
    %68 = vector.shape_cast %67 : vector<1x8x8xf32> to vector<8x8xf32>
    %cst_29 = arith.constant dense<0.000000e+00> : vector<8x256xf32>
    %69 = tpu.matmul %68, %66, %cst_29 {dimension_numbers = #tpu.dot_dimension_numbers<[1], [0], [0], [1], [0, 0, 1, 1], [], []>} : vector<8x8xf32>, vector<8x256xf32>, vector<8x256xf32> -> vector<8x256xf32>
    %70 = arith.addf %63, %69 : vector<8x256xf32>
    %c16_i32 = arith.constant 16 : i32
    %71 = tpu.dynamic_rotate %60 by %c16_i32 dim 1 : vector<8x256xf32>, i32 -> vector<8x256xf32>
    %72 = vector.broadcast %15 : vector<1x256xf32> to vector<8x256xf32>
    %73 = arith.mulf %71, %72 : vector<8x256xf32>
    %c1 = arith.constant 1 : index
    %c0_30 = arith.constant 0 : index
    %c0_31 = arith.constant 0 : index
    %74 = vector.load %arg4[%c1, %c0_30, %c0_31] : memref<9x8x8xf32, #tpu.memory_space<vmem>>, vector<1x8x8xf32>
    %75 = vector.shape_cast %74 : vector<1x8x8xf32> to vector<8x8xf32>
    %cst_32 = arith.constant dense<0.000000e+00> : vector<8x256xf32>
    %76 = tpu.matmul %75, %73, %cst_32 {dimension_numbers = #tpu.dot_dimension_numbers<[1], [0], [0], [1], [0, 0, 1, 1], [], []>} : vector<8x8xf32>, vector<8x256xf32>, vector<8x256xf32> -> vector<8x256xf32>
    %77 = arith.addf %70, %76 : vector<8x256xf32>
    %c15_i32_33 = arith.constant 15 : i32
    %78 = tpu.dynamic_rotate %60 by %c15_i32_33 dim 1 : vector<8x256xf32>, i32 -> vector<8x256xf32>
    %79 = vector.broadcast %22 : vector<1x256xf32> to vector<8x256xf32>
    %80 = arith.mulf %78, %79 : vector<8x256xf32>
    %c2 = arith.constant 2 : index
    %c0_34 = arith.constant 0 : index
    %c0_35 = arith.constant 0 : index
    %81 = vector.load %arg4[%c2, %c0_34, %c0_35] : memref<9x8x8xf32, #tpu.memory_space<vmem>>, vector<1x8x8xf32>
    %82 = vector.shape_cast %81 : vector<1x8x8xf32> to vector<8x8xf32>
    %cst_36 = arith.constant dense<0.000000e+00> : vector<8x256xf32>
    %83 = tpu.matmul %82, %80, %cst_36 {dimension_numbers = #tpu.dot_dimension_numbers<[1], [0], [0], [1], [0, 0, 1, 1], [], []>} : vector<8x8xf32>, vector<8x256xf32>, vector<8x256xf32> -> vector<8x256xf32>
    %84 = arith.addf %77, %83 : vector<8x256xf32>
    %c1_i32_37 = arith.constant 1 : i32
    %85 = tpu.dynamic_rotate %60 by %c1_i32_37 dim 1 : vector<8x256xf32>, i32 -> vector<8x256xf32>
    %86 = vector.broadcast %26 : vector<1x256xf32> to vector<8x256xf32>
    %87 = arith.mulf %85, %86 : vector<8x256xf32>
    %c3 = arith.constant 3 : index
    %c0_38 = arith.constant 0 : index
    %c0_39 = arith.constant 0 : index
    %88 = vector.load %arg4[%c3, %c0_38, %c0_39] : memref<9x8x8xf32, #tpu.memory_space<vmem>>, vector<1x8x8xf32>
    %89 = vector.shape_cast %88 : vector<1x8x8xf32> to vector<8x8xf32>
    %cst_40 = arith.constant dense<0.000000e+00> : vector<8x256xf32>
    %90 = tpu.matmul %89, %87, %cst_40 {dimension_numbers = #tpu.dot_dimension_numbers<[1], [0], [0], [1], [0, 0, 1, 1], [], []>} : vector<8x8xf32>, vector<8x256xf32>, vector<8x256xf32> -> vector<8x256xf32>
    %91 = arith.addf %84, %90 : vector<8x256xf32>
    %c255_i32 = arith.constant 255 : i32
    %92 = tpu.dynamic_rotate %60 by %c255_i32 dim 1 : vector<8x256xf32>, i32 -> vector<8x256xf32>
    %93 = vector.broadcast %30 : vector<1x256xf32> to vector<8x256xf32>
    %94 = arith.mulf %92, %93 : vector<8x256xf32>
    %c5 = arith.constant 5 : index
    %c0_41 = arith.constant 0 : index
    %c0_42 = arith.constant 0 : index
    %95 = vector.load %arg4[%c5, %c0_41, %c0_42] : memref<9x8x8xf32, #tpu.memory_space<vmem>>, vector<1x8x8xf32>
    %96 = vector.shape_cast %95 : vector<1x8x8xf32> to vector<8x8xf32>
    %cst_43 = arith.constant dense<0.000000e+00> : vector<8x256xf32>
    %97 = tpu.matmul %96, %94, %cst_43 {dimension_numbers = #tpu.dot_dimension_numbers<[1], [0], [0], [1], [0, 0, 1, 1], [], []>} : vector<8x8xf32>, vector<8x256xf32>, vector<8x256xf32> -> vector<8x256xf32>
    %98 = arith.addf %91, %97 : vector<8x256xf32>
    %c241_i32 = arith.constant 241 : i32
    %99 = tpu.dynamic_rotate %60 by %c241_i32 dim 1 : vector<8x256xf32>, i32 -> vector<8x256xf32>
    %100 = vector.broadcast %37 : vector<1x256xf32> to vector<8x256xf32>
    %101 = arith.mulf %99, %100 : vector<8x256xf32>
    %c6 = arith.constant 6 : index
    %c0_44 = arith.constant 0 : index
    %c0_45 = arith.constant 0 : index
    %102 = vector.load %arg4[%c6, %c0_44, %c0_45] : memref<9x8x8xf32, #tpu.memory_space<vmem>>, vector<1x8x8xf32>
    %103 = vector.shape_cast %102 : vector<1x8x8xf32> to vector<8x8xf32>
    %cst_46 = arith.constant dense<0.000000e+00> : vector<8x256xf32>
    %104 = tpu.matmul %103, %101, %cst_46 {dimension_numbers = #tpu.dot_dimension_numbers<[1], [0], [0], [1], [0, 0, 1, 1], [], []>} : vector<8x8xf32>, vector<8x256xf32>, vector<8x256xf32> -> vector<8x256xf32>
    %105 = arith.addf %98, %104 : vector<8x256xf32>
    %c240_i32 = arith.constant 240 : i32
    %106 = tpu.dynamic_rotate %60 by %c240_i32 dim 1 : vector<8x256xf32>, i32 -> vector<8x256xf32>
    %107 = vector.broadcast %41 : vector<1x256xf32> to vector<8x256xf32>
    %108 = arith.mulf %106, %107 : vector<8x256xf32>
    %c7 = arith.constant 7 : index
    %c0_47 = arith.constant 0 : index
    %c0_48 = arith.constant 0 : index
    %109 = vector.load %arg4[%c7, %c0_47, %c0_48] : memref<9x8x8xf32, #tpu.memory_space<vmem>>, vector<1x8x8xf32>
    %110 = vector.shape_cast %109 : vector<1x8x8xf32> to vector<8x8xf32>
    %cst_49 = arith.constant dense<0.000000e+00> : vector<8x256xf32>
    %111 = tpu.matmul %110, %108, %cst_49 {dimension_numbers = #tpu.dot_dimension_numbers<[1], [0], [0], [1], [0, 0, 1, 1], [], []>} : vector<8x8xf32>, vector<8x256xf32>, vector<8x256xf32> -> vector<8x256xf32>
    %112 = arith.addf %105, %111 : vector<8x256xf32>
    %c239_i32 = arith.constant 239 : i32
    %113 = tpu.dynamic_rotate %60 by %c239_i32 dim 1 : vector<8x256xf32>, i32 -> vector<8x256xf32>
    %114 = vector.broadcast %48 : vector<1x256xf32> to vector<8x256xf32>
    %115 = arith.mulf %113, %114 : vector<8x256xf32>
    %c8 = arith.constant 8 : index
    %c0_50 = arith.constant 0 : index
    %c0_51 = arith.constant 0 : index
    %116 = vector.load %arg4[%c8, %c0_50, %c0_51] : memref<9x8x8xf32, #tpu.memory_space<vmem>>, vector<1x8x8xf32>
    %117 = vector.shape_cast %116 : vector<1x8x8xf32> to vector<8x8xf32>
    %cst_52 = arith.constant dense<0.000000e+00> : vector<8x256xf32>
    %118 = tpu.matmul %117, %115, %cst_52 {dimension_numbers = #tpu.dot_dimension_numbers<[1], [0], [0], [1], [0, 0, 1, 1], [], []>} : vector<8x8xf32>, vector<8x256xf32>, vector<8x256xf32> -> vector<8x256xf32>
    %119 = arith.addf %112, %118 : vector<8x256xf32>
    %120 = vector.broadcast %51 : vector<8x1xf32> to vector<8x256xf32>
    %121 = arith.addf %119, %120 : vector<8x256xf32>
    %cst_53 = arith.constant 0.000000e+00 : f32
    %122 = vector.broadcast %cst_53 : f32 to vector<8x256xf32>
    %123 = arith.maximumf %121, %122 : vector<8x256xf32>
    %cst_54 = arith.constant dense<0.000000e+00> : vector<4x256xf32>
    %124 = tpu.matmul %52, %123, %cst_54 {dimension_numbers = #tpu.dot_dimension_numbers<[1], [0], [0], [1], [0, 0, 1, 1], [], []>} : vector<4x8xf32>, vector<8x256xf32>, vector<4x256xf32> -> vector<4x256xf32>
    %125 = vector.broadcast %53 : vector<4x1xf32> to vector<4x256xf32>
    %126 = arith.addf %124, %125 : vector<4x256xf32>
    %127 = arith.addf %126, %55 : vector<4x256xf32>
    %cst_55 = arith.constant 0.000000e+00 : f32
    %128 = vector.broadcast %cst_55 : f32 to vector<4x256xf32>
    %129 = arith.maximumf %127, %128 : vector<4x256xf32>
    %cst_56 = arith.constant 5.000000e-01 : f32
    %130 = vector.broadcast %cst_56 : f32 to vector<4x256xf32>
    %131 = arith.mulf %130, %129 : vector<4x256xf32>
    %132 = math.tanh %131 : vector<4x256xf32>
    %cst_57 = arith.constant 5.000000e-01 : f32
    %133 = vector.broadcast %cst_57 : f32 to vector<4x256xf32>
    %134 = arith.mulf %133, %132 : vector<4x256xf32>
    %cst_58 = arith.constant 5.000000e-01 : f32
    %135 = vector.broadcast %cst_58 : f32 to vector<4x256xf32>
    %136 = arith.addf %135, %134 : vector<4x256xf32>
    %137 = arith.mulf %55, %136 : vector<4x256xf32>
    %c0_59 = arith.constant 0 : index
    %c0_60 = arith.constant 0 : index
    %c0_61 = arith.constant 0 : index
    %138 = vector.load %arg8[%c0_59, %c0_60, %c0_61] : memref<2x4x256xf32, #tpu.memory_space<vmem>>, vector<1x4x256xf32>
    %139 = vector.shape_cast %138 : vector<1x4x256xf32> to vector<4x256xf32>
    %140 = vector.shape_cast %137 : vector<4x256xf32> to vector<1x4x256xf32>
    tpu.vector_store %arg8[%c0_59, %c0_60, %c0_61], %140 {strides = array<i32>} : memref<2x4x256xf32, #tpu.memory_space<vmem>>, vector<1x4x256xf32>,
    %c1_62 = arith.constant 1 : index
    %c0_63 = arith.constant 0 : index
    %c0_64 = arith.constant 0 : index
    %141 = vector.load %arg1[%c1_62, %c0_63, %c0_64] : memref<2x4x256xf32, #tpu.memory_space<vmem>>, vector<1x4x256xf32>
    %142 = vector.shape_cast %141 : vector<1x4x256xf32> to vector<4x256xf32>
    %cst_65 = arith.constant dense<0.000000e+00> : vector<8x256xf32>
    %143 = tpu.matmul %49, %142, %cst_65 {dimension_numbers = #tpu.dot_dimension_numbers<[1], [0], [0], [1], [0, 0, 1, 1], [], []>} : vector<8x4xf32>, vector<4x256xf32>, vector<8x256xf32> -> vector<8x256xf32>
    %144 = vector.broadcast %50 : vector<8x1xf32> to vector<8x256xf32>
    %145 = arith.addf %143, %144 : vector<8x256xf32>
    %cst_66 = arith.constant 0.000000e+00 : f32
    %146 = vector.broadcast %cst_66 : f32 to vector<8x256xf32>
    %147 = arith.maximumf %145, %146 : vector<8x256xf32>
    %c4_67 = arith.constant 4 : index
    %c0_68 = arith.constant 0 : index
    %c0_69 = arith.constant 0 : index
    %148 = vector.load %arg4[%c4_67, %c0_68, %c0_69] : memref<9x8x8xf32, #tpu.memory_space<vmem>>, vector<1x8x8xf32>
    %149 = vector.shape_cast %148 : vector<1x8x8xf32> to vector<8x8xf32>
    %cst_70 = arith.constant dense<0.000000e+00> : vector<8x256xf32>
    %150 = tpu.matmul %149, %147, %cst_70 {dimension_numbers = #tpu.dot_dimension_numbers<[1], [0], [0], [1], [0, 0, 1, 1], [], []>} : vector<8x8xf32>, vector<8x256xf32>, vector<8x256xf32> -> vector<8x256xf32>
    %c17_i32_71 = arith.constant 17 : i32
    %151 = tpu.dynamic_rotate %147 by %c17_i32_71 dim 1 : vector<8x256xf32>, i32 -> vector<8x256xf32>
    %152 = vector.broadcast %11 : vector<1x256xf32> to vector<8x256xf32>
    %153 = arith.mulf %151, %152 : vector<8x256xf32>
    %c0_72 = arith.constant 0 : index
    %c0_73 = arith.constant 0 : index
    %c0_74 = arith.constant 0 : index
    %154 = vector.load %arg4[%c0_72, %c0_73, %c0_74] : memref<9x8x8xf32, #tpu.memory_space<vmem>>, vector<1x8x8xf32>
    %155 = vector.shape_cast %154 : vector<1x8x8xf32> to vector<8x8xf32>
    %cst_75 = arith.constant dense<0.000000e+00> : vector<8x256xf32>
    %156 = tpu.matmul %155, %153, %cst_75 {dimension_numbers = #tpu.dot_dimension_numbers<[1], [0], [0], [1], [0, 0, 1, 1], [], []>} : vector<8x8xf32>, vector<8x256xf32>, vector<8x256xf32> -> vector<8x256xf32>
    %157 = arith.addf %150, %156 : vector<8x256xf32>
    %c16_i32_76 = arith.constant 16 : i32
    %158 = tpu.dynamic_rotate %147 by %c16_i32_76 dim 1 : vector<8x256xf32>, i32 -> vector<8x256xf32>
    %159 = vector.broadcast %15 : vector<1x256xf32> to vector<8x256xf32>
    %160 = arith.mulf %158, %159 : vector<8x256xf32>
    %c1_77 = arith.constant 1 : index
    %c0_78 = arith.constant 0 : index
    %c0_79 = arith.constant 0 : index
    %161 = vector.load %arg4[%c1_77, %c0_78, %c0_79] : memref<9x8x8xf32, #tpu.memory_space<vmem>>, vector<1x8x8xf32>
    %162 = vector.shape_cast %161 : vector<1x8x8xf32> to vector<8x8xf32>
    %cst_80 = arith.constant dense<0.000000e+00> : vector<8x256xf32>
    %163 = tpu.matmul %162, %160, %cst_80 {dimension_numbers = #tpu.dot_dimension_numbers<[1], [0], [0], [1], [0, 0, 1, 1], [], []>} : vector<8x8xf32>, vector<8x256xf32>, vector<8x256xf32> -> vector<8x256xf32>
    %164 = arith.addf %157, %163 : vector<8x256xf32>
    %c15_i32_81 = arith.constant 15 : i32
    %165 = tpu.dynamic_rotate %147 by %c15_i32_81 dim 1 : vector<8x256xf32>, i32 -> vector<8x256xf32>
    %166 = vector.broadcast %22 : vector<1x256xf32> to vector<8x256xf32>
    %167 = arith.mulf %165, %166 : vector<8x256xf32>
    %c2_82 = arith.constant 2 : index
    %c0_83 = arith.constant 0 : index
    %c0_84 = arith.constant 0 : index
    %168 = vector.load %arg4[%c2_82, %c0_83, %c0_84] : memref<9x8x8xf32, #tpu.memory_space<vmem>>, vector<1x8x8xf32>
    %169 = vector.shape_cast %168 : vector<1x8x8xf32> to vector<8x8xf32>
    %cst_85 = arith.constant dense<0.000000e+00> : vector<8x256xf32>
    %170 = tpu.matmul %169, %167, %cst_85 {dimension_numbers = #tpu.dot_dimension_numbers<[1], [0], [0], [1], [0, 0, 1, 1], [], []>} : vector<8x8xf32>, vector<8x256xf32>, vector<8x256xf32> -> vector<8x256xf32>
    %171 = arith.addf %164, %170 : vector<8x256xf32>
    %c1_i32_86 = arith.constant 1 : i32
    %172 = tpu.dynamic_rotate %147 by %c1_i32_86 dim 1 : vector<8x256xf32>, i32 -> vector<8x256xf32>
    %173 = vector.broadcast %26 : vector<1x256xf32> to vector<8x256xf32>
    %174 = arith.mulf %172, %173 : vector<8x256xf32>
    %c3_87 = arith.constant 3 : index
    %c0_88 = arith.constant 0 : index
    %c0_89 = arith.constant 0 : index
    %175 = vector.load %arg4[%c3_87, %c0_88, %c0_89] : memref<9x8x8xf32, #tpu.memory_space<vmem>>, vector<1x8x8xf32>
    %176 = vector.shape_cast %175 : vector<1x8x8xf32> to vector<8x8xf32>
    %cst_90 = arith.constant dense<0.000000e+00> : vector<8x256xf32>
    %177 = tpu.matmul %176, %174, %cst_90 {dimension_numbers = #tpu.dot_dimension_numbers<[1], [0], [0], [1], [0, 0, 1, 1], [], []>} : vector<8x8xf32>, vector<8x256xf32>, vector<8x256xf32> -> vector<8x256xf32>
    %178 = arith.addf %171, %177 : vector<8x256xf32>
    %c255_i32_91 = arith.constant 255 : i32
    %179 = tpu.dynamic_rotate %147 by %c255_i32_91 dim 1 : vector<8x256xf32>, i32 -> vector<8x256xf32>
    %180 = vector.broadcast %30 : vector<1x256xf32> to vector<8x256xf32>
    %181 = arith.mulf %179, %180 : vector<8x256xf32>
    %c5_92 = arith.constant 5 : index
    %c0_93 = arith.constant 0 : index
    %c0_94 = arith.constant 0 : index
    %182 = vector.load %arg4[%c5_92, %c0_93, %c0_94] : memref<9x8x8xf32, #tpu.memory_space<vmem>>, vector<1x8x8xf32>
    %183 = vector.shape_cast %182 : vector<1x8x8xf32> to vector<8x8xf32>
    %cst_95 = arith.constant dense<0.000000e+00> : vector<8x256xf32>
    %184 = tpu.matmul %183, %181, %cst_95 {dimension_numbers = #tpu.dot_dimension_numbers<[1], [0], [0], [1], [0, 0, 1, 1], [], []>} : vector<8x8xf32>, vector<8x256xf32>, vector<8x256xf32> -> vector<8x256xf32>
    %185 = arith.addf %178, %184 : vector<8x256xf32>
    %c241_i32_96 = arith.constant 241 : i32
    %186 = tpu.dynamic_rotate %147 by %c241_i32_96 dim 1 : vector<8x256xf32>, i32 -> vector<8x256xf32>
    %187 = vector.broadcast %37 : vector<1x256xf32> to vector<8x256xf32>
    %188 = arith.mulf %186, %187 : vector<8x256xf32>
    %c6_97 = arith.constant 6 : index
    %c0_98 = arith.constant 0 : index
    %c0_99 = arith.constant 0 : index
    %189 = vector.load %arg4[%c6_97, %c0_98, %c0_99] : memref<9x8x8xf32, #tpu.memory_space<vmem>>, vector<1x8x8xf32>
    %190 = vector.shape_cast %189 : vector<1x8x8xf32> to vector<8x8xf32>
    %cst_100 = arith.constant dense<0.000000e+00> : vector<8x256xf32>
    %191 = tpu.matmul %190, %188, %cst_100 {dimension_numbers = #tpu.dot_dimension_numbers<[1], [0], [0], [1], [0, 0, 1, 1], [], []>} : vector<8x8xf32>, vector<8x256xf32>, vector<8x256xf32> -> vector<8x256xf32>
    %192 = arith.addf %185, %191 : vector<8x256xf32>
    %c240_i32_101 = arith.constant 240 : i32
    %193 = tpu.dynamic_rotate %147 by %c240_i32_101 dim 1 : vector<8x256xf32>, i32 -> vector<8x256xf32>
    %194 = vector.broadcast %41 : vector<1x256xf32> to vector<8x256xf32>
    %195 = arith.mulf %193, %194 : vector<8x256xf32>
    %c7_102 = arith.constant 7 : index
    %c0_103 = arith.constant 0 : index
    %c0_104 = arith.constant 0 : index
    %196 = vector.load %arg4[%c7_102, %c0_103, %c0_104] : memref<9x8x8xf32, #tpu.memory_space<vmem>>, vector<1x8x8xf32>
    %197 = vector.shape_cast %196 : vector<1x8x8xf32> to vector<8x8xf32>
    %cst_105 = arith.constant dense<0.000000e+00> : vector<8x256xf32>
    %198 = tpu.matmul %197, %195, %cst_105 {dimension_numbers = #tpu.dot_dimension_numbers<[1], [0], [0], [1], [0, 0, 1, 1], [], []>} : vector<8x8xf32>, vector<8x256xf32>, vector<8x256xf32> -> vector<8x256xf32>
    %199 = arith.addf %192, %198 : vector<8x256xf32>
    %c239_i32_106 = arith.constant 239 : i32
    %200 = tpu.dynamic_rotate %147 by %c239_i32_106 dim 1 : vector<8x256xf32>, i32 -> vector<8x256xf32>
    %201 = vector.broadcast %48 : vector<1x256xf32> to vector<8x256xf32>
    %202 = arith.mulf %200, %201 : vector<8x256xf32>
    %c8_107 = arith.constant 8 : index
    %c0_108 = arith.constant 0 : index
    %c0_109 = arith.constant 0 : index
    %203 = vector.load %arg4[%c8_107, %c0_108, %c0_109] : memref<9x8x8xf32, #tpu.memory_space<vmem>>, vector<1x8x8xf32>
    %204 = vector.shape_cast %203 : vector<1x8x8xf32> to vector<8x8xf32>
    %cst_110 = arith.constant dense<0.000000e+00> : vector<8x256xf32>
    %205 = tpu.matmul %204, %202, %cst_110 {dimension_numbers = #tpu.dot_dimension_numbers<[1], [0], [0], [1], [0, 0, 1, 1], [], []>} : vector<8x8xf32>, vector<8x256xf32>, vector<8x256xf32> -> vector<8x256xf32>
    %206 = arith.addf %199, %205 : vector<8x256xf32>
    %207 = vector.broadcast %51 : vector<8x1xf32> to vector<8x256xf32>
    %208 = arith.addf %206, %207 : vector<8x256xf32>
    %cst_111 = arith.constant 0.000000e+00 : f32
    %209 = vector.broadcast %cst_111 : f32 to vector<8x256xf32>
    %210 = arith.maximumf %208, %209 : vector<8x256xf32>
    %cst_112 = arith.constant dense<0.000000e+00> : vector<4x256xf32>
    %211 = tpu.matmul %52, %210, %cst_112 {dimension_numbers = #tpu.dot_dimension_numbers<[1], [0], [0], [1], [0, 0, 1, 1], [], []>} : vector<4x8xf32>, vector<8x256xf32>, vector<4x256xf32> -> vector<4x256xf32>
    %212 = vector.broadcast %53 : vector<4x1xf32> to vector<4x256xf32>
    %213 = arith.addf %211, %212 : vector<4x256xf32>
    %214 = arith.addf %213, %142 : vector<4x256xf32>
    %cst_113 = arith.constant 0.000000e+00 : f32
    %215 = vector.broadcast %cst_113 : f32 to vector<4x256xf32>
    %216 = arith.maximumf %214, %215 : vector<4x256xf32>
    %cst_114 = arith.constant 5.000000e-01 : f32
    %217 = vector.broadcast %cst_114 : f32 to vector<4x256xf32>
    %218 = arith.mulf %217, %216 : vector<4x256xf32>
    %219 = math.tanh %218 : vector<4x256xf32>
    %cst_115 = arith.constant 5.000000e-01 : f32
    %220 = vector.broadcast %cst_115 : f32 to vector<4x256xf32>
    %221 = arith.mulf %220, %219 : vector<4x256xf32>
    %cst_116 = arith.constant 5.000000e-01 : f32
    %222 = vector.broadcast %cst_116 : f32 to vector<4x256xf32>
    %223 = arith.addf %222, %221 : vector<4x256xf32>
    %224 = arith.mulf %142, %223 : vector<4x256xf32>
    %c1_117 = arith.constant 1 : index
    %c0_118 = arith.constant 0 : index
    %c0_119 = arith.constant 0 : index
    %225 = vector.load %arg8[%c1_117, %c0_118, %c0_119] : memref<2x4x256xf32, #tpu.memory_space<vmem>>, vector<1x4x256xf32>
    %226 = vector.shape_cast %225 : vector<1x4x256xf32> to vector<4x256xf32>
    %227 = vector.shape_cast %224 : vector<4x256xf32> to vector<1x4x256xf32>
    tpu.vector_store %arg8[%c1_117, %c0_118, %c0_119], %227 {strides = array<i32>} : memref<2x4x256xf32, #tpu.memory_space<vmem>>, vector<1x4x256xf32>,
    return
  }
  func.func @transform_0(%arg0: i32) -> (i32, i32, i32) {
    %c0_i32 = arith.constant 0 : i32
    %c0_i32_0 = arith.constant 0 : i32
    %c0_i32_1 = arith.constant 0 : i32
    return %arg0, %c0_i32, %c0_i32_0 : i32, i32, i32
  }
  func.func @transform_1(%arg0: i32) -> (i32, i32) {
    %c0_i32 = arith.constant 0 : i32
    %c0_i32_0 = arith.constant 0 : i32
    %c0_i32_1 = arith.constant 0 : i32
    return %c0_i32, %c0_i32_0 : i32, i32
  }
  func.func @transform_2(%arg0: i32) -> (i32, i32) {
    %c0_i32 = arith.constant 0 : i32
    %c0_i32_0 = arith.constant 0 : i32
    %c0_i32_1 = arith.constant 0 : i32
    return %c0_i32, %c0_i32_0 : i32, i32
  }
  func.func @transform_3(%arg0: i32) -> (i32, i32, i32) {
    %c0_i32 = arith.constant 0 : i32
    %c0_i32_0 = arith.constant 0 : i32
    %c0_i32_1 = arith.constant 0 : i32
    %c0_i32_2 = arith.constant 0 : i32
    return %c0_i32, %c0_i32_0, %c0_i32_1 : i32, i32, i32
  }
  func.func @transform_4(%arg0: i32) -> (i32, i32) {
    %c0_i32 = arith.constant 0 : i32
    %c0_i32_0 = arith.constant 0 : i32
    %c0_i32_1 = arith.constant 0 : i32
    return %c0_i32, %c0_i32_0 : i32, i32
  }
  func.func @transform_5(%arg0: i32) -> (i32, i32) {
    %c0_i32 = arith.constant 0 : i32
    %c0_i32_0 = arith.constant 0 : i32
    %c0_i32_1 = arith.constant 0 : i32
    return %c0_i32, %c0_i32_0 : i32, i32
  }
  func.func @transform_6(%arg0: i32) -> (i32, i32) {
    %c0_i32 = arith.constant 0 : i32
    %c0_i32_0 = arith.constant 0 : i32
    %c0_i32_1 = arith.constant 0 : i32
    return %c0_i32, %c0_i32_0 : i32, i32
  }
  func.func @transform_7(%arg0: i32) -> (i32, i32, i32) {
    %c0_i32 = arith.constant 0 : i32
    %c0_i32_0 = arith.constant 0 : i32
    %c0_i32_1 = arith.constant 0 : i32
    return %arg0, %c0_i32, %c0_i32_0 : i32, i32, i32
  }
}

</mosaic_0001>

<llo_original>
// kernel: tpu_custom_call.1
$region0: #{tpu_custom_call.1}
  #allocation0 [shape = 'u32[]', space=smem, size = 0x4, offset = 0x4, fixed_abs, tag = 'smem constant byte address 0x4 - core index']
  #allocation1 [shape = 'u32[72,128]{1,0:T(1,128)}', space=vmem, size = 0x9000, scoped, tag = 'internal scratch']
  %s0 = inlined_call_operand.vmem [shape: f32[2,4,256], index: 0, kind: input, shape index: {}]
  %s1 = inlined_call_operand.vmem [shape: f32[8,4], index: 1, kind: input, shape index: {}]
  %s2 = inlined_call_operand.vmem [shape: f32[8,1], index: 2, kind: input, shape index: {}]
  %s3 = inlined_call_operand.vmem [shape: f32[9,8,8], index: 3, kind: input, shape index: {}]
  %s4 = inlined_call_operand.vmem [shape: f32[8,1], index: 4, kind: input, shape index: {}]
  %s5 = inlined_call_operand.vmem [shape: f32[4,8], index: 5, kind: input, shape index: {}]
  %s6 = inlined_call_operand.vmem [shape: f32[4,1], index: 6, kind: input, shape index: {}]
  %s7 = inlined_call_operand.hbm [shape: f32[2,4,256], index: 7, kind: output, shape index: {}]
  %s8 = sld [smem:[#allocation0]]
  $region38: #{tpu_custom_call.1} parent=0
    _
  %s10 = ssub.s32 1, %s8
  %s11 = scalar_select 0, %s10, %s8
  $region1: #{tpu_custom_call.1} parent=0
    #allocation2 [shape = 'u8[8192]{0}', space=vmem, size = 0x2000, scoped, tag = 'output window, operand 0, single buffered']
    #allocation3 [shape = 's32[1]{0}', space=sflag, size = 0x4, scoped, tag = 'scoped memory for tpu_custom_call.1']
    %12 = vsyncpa [#allocation3], 0
    // Predicated region
    $region2: #{tpu_custom_call.1} parent=1 // pred_check
      _
    $region3: #{tpu_custom_call.1} parent=1 // pred_check_branch
      %14 = sbr.rel (0) target = $region5
    $region4: #{tpu_custom_call.1} parent=1 // pred_region
      _
    $region5: #{tpu_custom_call.1} parent=1 // pred_fallthru
      _
    // Predicated region
    $region6: #{tpu_custom_call.1} parent=1 // pred_check
      _
    $region7: #{tpu_custom_call.1} parent=1 // pred_check_branch
      %16 = sbr.rel (0) target = $region9
    $region8: #{tpu_custom_call.1} parent=1 // pred_region
      _
    $region9: #{tpu_custom_call.1} parent=1 // pred_fallthru
      _
    // Predicated region
    $region10: #{tpu_custom_call.1} parent=1 // pred_check
      _
    $region11: #{tpu_custom_call.1} parent=1 // pred_check_branch
      %18 = sbr.rel (0) target = $region13
    $region12: #{tpu_custom_call.1} parent=1 // pred_region
      _
    $region13: #{tpu_custom_call.1} parent=1 // pred_fallthru
      _
    // Predicated region
    $region14: #{tpu_custom_call.1} parent=1 // pred_check
      _
    $region15: #{tpu_custom_call.1} parent=1 // pred_check_branch
      %20 = sbr.rel (0) target = $region17
    $region16: #{tpu_custom_call.1} parent=1 // pred_region
      _
    $region17: #{tpu_custom_call.1} parent=1 // pred_fallthru
      _
    // Predicated region
    $region18: #{tpu_custom_call.1} parent=1 // pred_check
      _
    $region19: #{tpu_custom_call.1} parent=1 // pred_check_branch
      %22 = sbr.rel (0) target = $region21
    $region20: #{tpu_custom_call.1} parent=1 // pred_region
      _
    $region21: #{tpu_custom_call.1} parent=1 // pred_fallthru
      _
    // Predicated region
    $region22: #{tpu_custom_call.1} parent=1 // pred_check
      _
    $region23: #{tpu_custom_call.1} parent=1 // pred_check_branch
      %24 = sbr.rel (0) target = $region25
    $region24: #{tpu_custom_call.1} parent=1 // pred_region
      _
    $region25: #{tpu_custom_call.1} parent=1 // pred_fallthru
      _
    // Predicated region
    $region26: #{tpu_custom_call.1} parent=1 // pred_check
      _
    $region27: #{tpu_custom_call.1} parent=1 // pred_check_branch
      %26 = sbr.rel (0) target = $region29
    $region28: #{tpu_custom_call.1} parent=1 // pred_region
      _
    $region29: #{tpu_custom_call.1} parent=1 // pred_fallthru
      _
    %v27 = vlaneseq
    %v28 = vand.u32 %v27, 127
    %v29 = vadd.s32 %v28, 128
    %v30 = vand.u32 %v28, 15
    %v31 = vand.u32 %v29, 15
    %v32 = vshra.s32 %v28, 4
    %v33 = vshra.s32 %v29, 4
    %vm34 = vcmp.ge.s32.totalorder %v32, 1
    %vm35 = vcmp.ge.s32.totalorder %v33, 1
    %vm36 = vcmp.ge.s32.totalorder %v30, 1
    %vm37 = vcmp.ge.s32.totalorder %v31, 1
    %vm38 = vmand %vm34, %vm36
    %vm39 = vmand %vm35, %vm37
    %v40 = vsel %vm38, 1, 0
    %v41 = vsel %vm39, 1, 0
    %v42 = vcvt.s32.f32 %v40
    %v43 = vcvt.s32.f32 %v41
    %v44 = vsel %vm34, 1, 0
    %v45 = vsel %vm35, 1, 0
    %v46 = vcvt.s32.f32 %v44
    %v47 = vcvt.s32.f32 %v45
    %vm48 = vcmp.le.s32.totalorder %v30, 14
    %vm49 = vcmp.le.s32.totalorder %v31, 14
    %vm50 = vmand %vm34, %vm48
    %vm51 = vmand %vm35, %vm49
    %v52 = vsel %vm50, 1, 0
    %v53 = vsel %vm51, 1, 0
    %v54 = vcvt.s32.f32 %v52
    %v55 = vcvt.s32.f32 %v53
    %v56 = vsel %vm36, 1, 0
    %v57 = vsel %vm37, 1, 0
    %v58 = vcvt.s32.f32 %v56
    %v59 = vcvt.s32.f32 %v57
    %v60 = vsel %vm48, 1, 0
    %v61 = vsel %vm49, 1, 0
    %v62 = vcvt.s32.f32 %v60
    %v63 = vcvt.s32.f32 %v61
    %vm64 = vcmp.le.s32.totalorder %v32, 14
    %vm65 = vcmp.le.s32.totalorder %v33, 14
    %vm66 = vmand %vm64, %vm36
    %vm67 = vmand %vm65, %vm37
    %v68 = vsel %vm66, 1, 0
    %v69 = vsel %vm67, 1, 0
    %v70 = vcvt.s32.f32 %v68
    %v71 = vcvt.s32.f32 %v69
    %v72 = vsel %vm64, 1, 0
    %v73 = vsel %vm65, 1, 0
    %v74 = vcvt.s32.f32 %v72
    %v75 = vcvt.s32.f32 %v73
    %vm76 = vmand %vm64, %vm48
    %vm77 = vmand %vm65, %vm49
    %v78 = vsel %vm76, 1, 0
    %v79 = vsel %vm77, 1, 0
    %v80 = vcvt.s32.f32 %v78
    %v81 = vcvt.s32.f32 %v79
    %v82 = vld [vmem:[%s1] sm:$0xff]
    %v83 = vld [vmem:[%s2] sm:$0xff]
    %v84 = vld [vmem:[%s4] sm:$0xff]
    %v85 = vld [vmem:[%s5] sm:$0xf]
    %v86 = vld [vmem:[%s6] sm:$0xf]
    %v87 = vld [vmem:[%s0] sm:$0xff]
    %89 = vset.pattern.permute.xlu0 0
    %90 = vperm.xlu0 %89, %v83
    %v91 = vpop.permute.xlu0 %90
    %94 = vst [vmem:[#allocation1] ss:$2 sm:$0xff] %v87
    %v95 = vld.sshfl [vmem:[#allocation1] sm:$0xff pattern:$0x75316420]
    %v96 = vld.sshfl [vmem:[#allocation1 + $0x8] sm:$0xff pattern:$0x75316420]
    %vm97 = vcmask 31744
    %v99 = vsel %vm97, %v82, 0
    %vm101 = vcmask 1043456
    %v102 = vsel %vm101, %v95, 0
    %v104 = vsel %vm101, %v96, 0
    %106 = vmatpush.msra.mxu0 0.0
    %107 = vmatpush.msra.mxu0 0.0
    %108 = vmatpush.msra.mxu0 0.0
    %109 = vmatpush.msra.mxu0 0.0
    %110 = vmatpush.msra.mxu0 0.0
    %111 = vmatpush.msra.mxu0 0.0
    %112 = vmatpush.msra.mxu0 0.0
    %113 = vmatpush.msra.mxu0 0.0
    %114 = vmatpush.msra.mxu0 0.0
    %115 = vmatpush.msra.mxu0 0.0
    %116 = vmatpush.msra.mxu0 0.0
    %117 = vmatpush.msra.mxu0 0.0
    %118 = vmatpush.msra.mxu0 0.0
    %119 = vmatpush.msra.mxu0 0.0
    %120 = vmatpush.msra.mxu0 0.0
    %121 = vmatpush.msra.mxu0 %v102
    %122 = vmatmul.f32.gmra.mxu0 %v99
    %v123 = vpop.f32.mrf.mxu0
    %v124 = vadd.f32 %v91, %v123
    %125 = vdwg.mxu0
    %126 = vmatpush.msra.mxu0 0.0
    %127 = vmatpush.msra.mxu0 0.0
    %128 = vmatpush.msra.mxu0 0.0
    %129 = vmatpush.msra.mxu0 0.0
    %130 = vmatpush.msra.mxu0 0.0
    %131 = vmatpush.msra.mxu0 0.0
    %132 = vmatpush.msra.mxu0 0.0
    %133 = vmatpush.msra.mxu0 0.0
    %134 = vmatpush.msra.mxu0 0.0
    %135 = vmatpush.msra.mxu0 0.0
    %136 = vmatpush.msra.mxu0 0.0
    %137 = vmatpush.msra.mxu0 0.0
    %138 = vmatpush.msra.mxu0 0.0
    %139 = vmatpush.msra.mxu0 0.0
    %140 = vmatpush.msra.mxu0 0.0
    %141 = vmatpush.msra.mxu0 %v104
    %142 = vmatmul.f32.gmra.mxu0 %v99
    %v143 = vpop.f32.mrf.mxu0
    %v144 = vadd.f32 %v91, %v143
    %145 = vdwg.mxu0
    %v146 = vmax.f32 %v124, 0.0
    %v147 = vmax.f32 %v144, 0.0
    %s148 = scalar_lea.vmem %s3, 32
    %v149 = vld [vmem:[%s148] sm:$0xff]
    %150 = vrot.lane.b32.xlu0 %v146, 17
    %v151 = vpop.permute.xlu0 %150
    %152 = vrot.lane.b32.xlu0 %v147, 17
    %v153 = vpop.permute.xlu0 %152
    %vm154 = vcmp.lt.s32.totalorder %v28, 17
    %v155 = vsel %vm154, %v151, %v153
    %v156 = vsel %vm154, %v153, %v151
    %v157 = vmul.f32 %v156, %v42
    %v158 = vmul.f32 %v155, %v43
    %v159 = vld [vmem:[%s3] sm:$0xff]
    %vm160 = vcmask 64512
    %v162 = vsel %vm160, %v159, 0
    %164 = vmatpush.msra.mxu0 0.0
    %165 = vmatpush.msra.mxu0 0.0
    %166 = vmatpush.msra.mxu0 0.0
    %167 = vmatpush.msra.mxu0 0.0
    %168 = vmatpush.msra.mxu0 0.0
    %169 = vmatpush.msra.mxu0 0.0
    %170 = vmatpush.msra.mxu0 0.0
    %171 = vmatpush.msra.mxu0 0.0
    %172 = vmatpush.msra.mxu0 0.0
    %173 = vmatpush.msra.mxu0 0.0
    %174 = vmatpush.msra.mxu0 0.0
    %175 = vmatpush.msra.mxu0 0.0
    %176 = vmatpush.msra.mxu0 0.0
    %177 = vmatpush.msra.mxu0 0.0
    %178 = vmatpush.msra.mxu0 0.0
    %179 = vmatpush.msra.mxu0 %v157
    %180 = vmatmul.f32.gmra.mxu0 %v162
    %v181 = vpop.f32.mrf.mxu0
    %v182 = vadd.f32 0.0, %v181
    %183 = vdwg.mxu0
    %184 = vmatpush.msra.mxu0 0.0
    %185 = vmatpush.msra.mxu0 0.0
    %186 = vmatpush.msra.mxu0 0.0
    %187 = vmatpush.msra.mxu0 0.0
    %188 = vmatpush.msra.mxu0 0.0
    %189 = vmatpush.msra.mxu0 0.0
    %190 = vmatpush.msra.mxu0 0.0
    %191 = vmatpush.msra.mxu0 0.0
    %192 = vmatpush.msra.mxu0 0.0
    %193 = vmatpush.msra.mxu0 0.0
    %194 = vmatpush.msra.mxu0 0.0
    %195 = vmatpush.msra.mxu0 0.0
    %196 = vmatpush.msra.mxu0 0.0
    %197 = vmatpush.msra.mxu0 0.0
    %198 = vmatpush.msra.mxu0 0.0
    %199 = vmatpush.msra.mxu0 %v158
    %200 = vmatmul.f32.gmra.mxu0 %v162
    %v201 = vpop.f32.mrf.mxu0
    %v202 = vadd.f32 0.0, %v201
    %203 = vdwg.mxu0
    %v205 = vsel %vm160, %v149, 0
    %207 = vmatpush.msra.mxu0 0.0
    %208 = vmatpush.msra.mxu0 0.0
    %209 = vmatpush.msra.mxu0 0.0
    %210 = vmatpush.msra.mxu0 0.0
    %211 = vmatpush.msra.mxu0 0.0
    %212 = vmatpush.msra.mxu0 0.0
    %213 = vmatpush.msra.mxu0 0.0
    %214 = vmatpush.msra.mxu0 0.0
    %215 = vmatpush.msra.mxu0 0.0
    %216 = vmatpush.msra.mxu0 0.0
    %217 = vmatpush.msra.mxu0 0.0
    %218 = vmatpush.msra.mxu0 0.0
    %219 = vmatpush.msra.mxu0 0.0
    %220 = vmatpush.msra.mxu0 0.0
    %221 = vmatpush.msra.mxu0 0.0
    %222 = vmatpush.msra.mxu0 %v146
    %223 = vmatmul.f32.gmra.mxu0 %v205
    %v224 = vpop.f32.mrf.mxu0
    %v225 = vadd.f32 %v182, %v224
    %226 = vdwg.mxu0
    %227 = vmatpush.msra.mxu0 0.0
    %228 = vmatpush.msra.mxu0 0.0
    %229 = vmatpush.msra.mxu0 0.0
    %230 = vmatpush.msra.mxu0 0.0
    %231 = vmatpush.msra.mxu0 0.0
    %232 = vmatpush.msra.mxu0 0.0
    %233 = vmatpush.msra.mxu0 0.0
    %234 = vmatpush.msra.mxu0 0.0
    %235 = vmatpush.msra.mxu0 0.0
    %236 = vmatpush.msra.mxu0 0.0
    %237 = vmatpush.msra.mxu0 0.0
    %238 = vmatpush.msra.mxu0 0.0
    %239 = vmatpush.msra.mxu0 0.0
    %240 = vmatpush.msra.mxu0 0.0
    %241 = vmatpush.msra.mxu0 0.0
    %242 = vmatpush.msra.mxu0 %v147
    %243 = vmatmul.f32.gmra.mxu0 %v205
    %v244 = vpop.f32.mrf.mxu0
    %v245 = vadd.f32 %v202, %v244
    %246 = vdwg.mxu0
    %247 = vrot.lane.b32.xlu0 %v146, 16
    %v248 = vpop.permute.xlu0 %247
    %249 = vrot.lane.b32.xlu0 %v147, 16
    %v250 = vpop.permute.xlu0 %249
    %vm251 = vcmp.lt.s32.totalorder %v28, 16
    %v252 = vsel %vm251, %v248, %v250
    %v253 = vsel %vm251, %v250, %v248
    %v254 = vmul.f32 %v253, %v46
    %v255 = vmul.f32 %v252, %v47
    %s256 = scalar_lea.vmem %s3, 8
    %v257 = vld [vmem:[%s256] sm:$0xff]
    %v259 = vsel %vm160, %v257, 0
    %261 = vmatpush.msra.mxu0 0.0
    %262 = vmatpush.msra.mxu0 0.0
    %263 = vmatpush.msra.mxu0 0.0
    %264 = vmatpush.msra.mxu0 0.0
    %265 = vmatpush.msra.mxu0 0.0
    %266 = vmatpush.msra.mxu0 0.0
    %267 = vmatpush.msra.mxu0 0.0
    %268 = vmatpush.msra.mxu0 0.0
    %269 = vmatpush.msra.mxu0 0.0
    %270 = vmatpush.msra.mxu0 0.0
    %271 = vmatpush.msra.mxu0 0.0
    %272 = vmatpush.msra.mxu0 0.0
    %273 = vmatpush.msra.mxu0 0.0
    %274 = vmatpush.msra.mxu0 0.0
    %275 = vmatpush.msra.mxu0 0.0
    %276 = vmatpush.msra.mxu0 %v254
    %277 = vmatmul.f32.gmra.mxu0 %v259
    %v278 = vpop.f32.mrf.mxu0
    %v279 = vadd.f32 0.0, %v278
    %280 = vdwg.mxu0
    %281 = vmatpush.msra.mxu0 0.0
    %282 = vmatpush.msra.mxu0 0.0
    %283 = vmatpush.msra.mxu0 0.0
    %284 = vmatpush.msra.mxu0 0.0
    %285 = vmatpush.msra.mxu0 0.0
    %286 = vmatpush.msra.mxu0 0.0
    %287 = vmatpush.msra.mxu0 0.0
    %288 = vmatpush.msra.mxu0 0.0
    %289 = vmatpush.msra.mxu0 0.0
    %290 = vmatpush.msra.mxu0 0.0
    %291 = vmatpush.msra.mxu0 0.0
    %292 = vmatpush.msra.mxu0 0.0
    %293 = vmatpush.msra.mxu0 0.0
    %294 = vmatpush.msra.mxu0 0.0
    %295 = vmatpush.msra.mxu0 0.0
    %296 = vmatpush.msra.mxu0 %v255
    %297 = vmatmul.f32.gmra.mxu0 %v259
    %v298 = vpop.f32.mrf.mxu0
    %v299 = vadd.f32 0.0, %v298
    %300 = vdwg.mxu0
    %v301 = vadd.f32 %v225, %v279
    %v302 = vadd.f32 %v245, %v299
    %303 = vrot.lane.b32.xlu0 %v146, 15
    %v304 = vpop.permute.xlu0 %303
    %305 = vrot.lane.b32.xlu0 %v147, 15
    %v306 = vpop.permute.xlu0 %305
    %vm307 = vcmp.lt.s32.totalorder %v28, 15
    %v308 = vsel %vm307, %v304, %v306
    %v309 = vsel %vm307, %v306, %v304
    %v310 = vmul.f32 %v309, %v54
    %v311 = vmul.f32 %v308, %v55
    %s312 = scalar_lea.vmem %s3, 16
    %v313 = vld [vmem:[%s312] sm:$0xff]
    %v315 = vsel %vm160, %v313, 0
    %317 = vmatpush.msra.mxu0 0.0
    %318 = vmatpush.msra.mxu0 0.0
    %319 = vmatpush.msra.mxu0 0.0
    %320 = vmatpush.msra.mxu0 0.0
    %321 = vmatpush.msra.mxu0 0.0
    %322 = vmatpush.msra.mxu0 0.0
    %323 = vmatpush.msra.mxu0 0.0
    %324 = vmatpush.msra.mxu0 0.0
    %325 = vmatpush.msra.mxu0 0.0
    %326 = vmatpush.msra.mxu0 0.0
    %327 = vmatpush.msra.mxu0 0.0
    %328 = vmatpush.msra.mxu0 0.0
    %329 = vmatpush.msra.mxu0 0.0
    %330 = vmatpush.msra.mxu0 0.0
    %331 = vmatpush.msra.mxu0 0.0
    %332 = vmatpush.msra.mxu0 %v310
    %333 = vmatmul.f32.gmra.mxu0 %v315
    %v334 = vpop.f32.mrf.mxu0
    %v335 = vadd.f32 0.0, %v334
    %336 = vdwg.mxu0
    %337 = vmatpush.msra.mxu0 0.0
    %338 = vmatpush.msra.mxu0 0.0
    %339 = vmatpush.msra.mxu0 0.0
    %340 = vmatpush.msra.mxu0 0.0
    %341 = vmatpush.msra.mxu0 0.0
    %342 = vmatpush.msra.mxu0 0.0
    %343 = vmatpush.msra.mxu0 0.0
    %344 = vmatpush.msra.mxu0 0.0
    %345 = vmatpush.msra.mxu0 0.0
    %346 = vmatpush.msra.mxu0 0.0
    %347 = vmatpush.msra.mxu0 0.0
    %348 = vmatpush.msra.mxu0 0.0
    %349 = vmatpush.msra.mxu0 0.0
    %350 = vmatpush.msra.mxu0 0.0
    %351 = vmatpush.msra.mxu0 0.0
    %352 = vmatpush.msra.mxu0 %v311
    %353 = vmatmul.f32.gmra.mxu0 %v315
    %v354 = vpop.f32.mrf.mxu0
    %v355 = vadd.f32 0.0, %v354
    %356 = vdwg.mxu0
    %v357 = vadd.f32 %v301, %v335
    %v358 = vadd.f32 %v302, %v355
    %359 = vrot.lane.b32.xlu0 %v146, 1
    %v360 = vpop.permute.xlu0 %359
    %361 = vrot.lane.b32.xlu0 %v147, 1
    %v362 = vpop.permute.xlu0 %361
    %vm363 = vcmp.lt.s32.totalorder %v28, 1
    %v364 = vsel %vm363, %v360, %v362
    %v365 = vsel %vm363, %v362, %v360
    %v366 = vmul.f32 %v365, %v58
    %v367 = vmul.f32 %v364, %v59
    %s368 = scalar_lea.vmem %s3, 24
    %v369 = vld [vmem:[%s368] sm:$0xff]
    %v371 = vsel %vm160, %v369, 0
    %373 = vmatpush.msra.mxu0 0.0
    %374 = vmatpush.msra.mxu0 0.0
    %375 = vmatpush.msra.mxu0 0.0
    %376 = vmatpush.msra.mxu0 0.0
    %377 = vmatpush.msra.mxu0 0.0
    %378 = vmatpush.msra.mxu0 0.0
    %379 = vmatpush.msra.mxu0 0.0
    %380 = vmatpush.msra.mxu0 0.0
    %381 = vmatpush.msra.mxu0 0.0
    %382 = vmatpush.msra.mxu0 0.0
    %383 = vmatpush.msra.mxu0 0.0
    %384 = vmatpush.msra.mxu0 0.0
    %385 = vmatpush.msra.mxu0 0.0
    %386 = vmatpush.msra.mxu0 0.0
    %387 = vmatpush.msra.mxu0 0.0
    %388 = vmatpush.msra.mxu0 %v366
    %389 = vmatmul.f32.gmra.mxu0 %v371
    %v390 = vpop.f32.mrf.mxu0
    %v391 = vadd.f32 0.0, %v390
    %392 = vdwg.mxu0
    %393 = vmatpush.msra.mxu0 0.0
    %394 = vmatpush.msra.mxu0 0.0
    %395 = vmatpush.msra.mxu0 0.0
    %396 = vmatpush.msra.mxu0 0.0
    %397 = vmatpush.msra.mxu0 0.0
    %398 = vmatpush.msra.mxu0 0.0
    %399 = vmatpush.msra.mxu0 0.0
    %400 = vmatpush.msra.mxu0 0.0
    %401 = vmatpush.msra.mxu0 0.0
    %402 = vmatpush.msra.mxu0 0.0
    %403 = vmatpush.msra.mxu0 0.0
    %404 = vmatpush.msra.mxu0 0.0
    %405 = vmatpush.msra.mxu0 0.0
    %406 = vmatpush.msra.mxu0 0.0
    %407 = vmatpush.msra.mxu0 0.0
    %408 = vmatpush.msra.mxu0 %v367
    %409 = vmatmul.f32.gmra.mxu0 %v371
    %v410 = vpop.f32.mrf.mxu0
    %v411 = vadd.f32 0.0, %v410
    %412 = vdwg.mxu0
    %v413 = vadd.f32 %v357, %v391
    %v414 = vadd.f32 %v358, %v411
    %415 = vrot.lane.b32.xlu0 %v146, 127
    %v416 = vpop.permute.xlu0 %415
    %417 = vrot.lane.b32.xlu0 %v147, 127
    %v418 = vpop.permute.xlu0 %417
    %vm419 = vcmp.lt.s32.totalorder %v28, 127
    %v420 = vsel %vm419, %v416, %v418
    %v421 = vsel %vm419, %v418, %v416
    %v422 = vmul.f32 %v420, %v62
    %v423 = vmul.f32 %v421, %v63
    %s424 = scalar_lea.vmem %s3, 40
    %v425 = vld [vmem:[%s424] sm:$0xff]
    %v427 = vsel %vm160, %v425, 0
    %429 = vmatpush.msra.mxu0 0.0
    %430 = vmatpush.msra.mxu0 0.0
    %431 = vmatpush.msra.mxu0 0.0
    %432 = vmatpush.msra.mxu0 0.0
    %433 = vmatpush.msra.mxu0 0.0
    %434 = vmatpush.msra.mxu0 0.0
    %435 = vmatpush.msra.mxu0 0.0
    %436 = vmatpush.msra.mxu0 0.0
    %437 = vmatpush.msra.mxu0 0.0
    %438 = vmatpush.msra.mxu0 0.0
    %439 = vmatpush.msra.mxu0 0.0
    %440 = vmatpush.msra.mxu0 0.0
    %441 = vmatpush.msra.mxu0 0.0
    %442 = vmatpush.msra.mxu0 0.0
    %443 = vmatpush.msra.mxu0 0.0
    %444 = vmatpush.msra.mxu0 %v422
    %445 = vmatmul.f32.gmra.mxu0 %v427
    %v446 = vpop.f32.mrf.mxu0
    %v447 = vadd.f32 0.0, %v446
    %448 = vdwg.mxu0
    %449 = vmatpush.msra.mxu0 0.0
    %450 = vmatpush.msra.mxu0 0.0
    %451 = vmatpush.msra.mxu0 0.0
    %452 = vmatpush.msra.mxu0 0.0
    %453 = vmatpush.msra.mxu0 0.0
    %454 = vmatpush.msra.mxu0 0.0
    %455 = vmatpush.msra.mxu0 0.0
    %456 = vmatpush.msra.mxu0 0.0
    %457 = vmatpush.msra.mxu0 0.0
    %458 = vmatpush.msra.mxu0 0.0
    %459 = vmatpush.msra.mxu0 0.0
    %460 = vmatpush.msra.mxu0 0.0
    %461 = vmatpush.msra.mxu0 0.0
    %462 = vmatpush.msra.mxu0 0.0
    %463 = vmatpush.msra.mxu0 0.0
    %464 = vmatpush.msra.mxu0 %v423
    %465 = vmatmul.f32.gmra.mxu0 %v427
    %v466 = vpop.f32.mrf.mxu0
    %v467 = vadd.f32 0.0, %v466
    %468 = vdwg.mxu0
    %v469 = vadd.f32 %v413, %v447
    %v470 = vadd.f32 %v414, %v467
    %471 = vrot.lane.b32.xlu0 %v146, 113
    %v472 = vpop.permute.xlu0 %471
    %473 = vrot.lane.b32.xlu0 %v147, 113
    %v474 = vpop.permute.xlu0 %473
    %vm475 = vcmp.lt.s32.totalorder %v28, 113
    %v476 = vsel %vm475, %v472, %v474
    %v477 = vsel %vm475, %v474, %v472
    %v478 = vmul.f32 %v476, %v70
    %v479 = vmul.f32 %v477, %v71
    %s480 = scalar_lea.vmem %s3, 48
    %v481 = vld [vmem:[%s480] sm:$0xff]
    %v483 = vsel %vm160, %v481, 0
    %485 = vmatpush.msra.mxu0 0.0
    %486 = vmatpush.msra.mxu0 0.0
    %487 = vmatpush.msra.mxu0 0.0
    %488 = vmatpush.msra.mxu0 0.0
    %489 = vmatpush.msra.mxu0 0.0
    %490 = vmatpush.msra.mxu0 0.0
    %491 = vmatpush.msra.mxu0 0.0
    %492 = vmatpush.msra.mxu0 0.0
    %493 = vmatpush.msra.mxu0 0.0
    %494 = vmatpush.msra.mxu0 0.0
    %495 = vmatpush.msra.mxu0 0.0
    %496 = vmatpush.msra.mxu0 0.0
    %497 = vmatpush.msra.mxu0 0.0
    %498 = vmatpush.msra.mxu0 0.0
    %499 = vmatpush.msra.mxu0 0.0
    %500 = vmatpush.msra.mxu0 %v478
    %501 = vmatmul.f32.gmra.mxu0 %v483
    %v502 = vpop.f32.mrf.mxu0
    %v503 = vadd.f32 0.0, %v502
    %504 = vdwg.mxu0
    %505 = vmatpush.msra.mxu0 0.0
    %506 = vmatpush.msra.mxu0 0.0
    %507 = vmatpush.msra.mxu0 0.0
    %508 = vmatpush.msra.mxu0 0.0
    %509 = vmatpush.msra.mxu0 0.0
    %510 = vmatpush.msra.mxu0 0.0
    %511 = vmatpush.msra.mxu0 0.0
    %512 = vmatpush.msra.mxu0 0.0
    %513 = vmatpush.msra.mxu0 0.0
    %514 = vmatpush.msra.mxu0 0.0
    %515 = vmatpush.msra.mxu0 0.0
    %516 = vmatpush.msra.mxu0 0.0
    %517 = vmatpush.msra.mxu0 0.0
    %518 = vmatpush.msra.mxu0 0.0
    %519 = vmatpush.msra.mxu0 0.0
    %520 = vmatpush.msra.mxu0 %v479
    %521 = vmatmul.f32.gmra.mxu0 %v483
    %v522 = vpop.f32.mrf.mxu0
    %v523 = vadd.f32 0.0, %v522
    %524 = vdwg.mxu0
    %v525 = vadd.f32 %v469, %v503
    %v526 = vadd.f32 %v470, %v523
    %527 = vrot.lane.b32.xlu0 %v146, 112
    %v528 = vpop.permute.xlu0 %527
    %529 = vrot.lane.b32.xlu0 %v147, 112
    %v530 = vpop.permute.xlu0 %529
    %vm531 = vcmp.lt.s32.totalorder %v28, 112
    %v532 = vsel %vm531, %v528, %v530
    %v533 = vsel %vm531, %v530, %v528
    %v534 = vmul.f32 %v532, %v74
    %v535 = vmul.f32 %v533, %v75
    %s536 = scalar_lea.vmem %s3, 56
    %v537 = vld [vmem:[%s536] sm:$0xff]
    %v539 = vsel %vm160, %v537, 0
    %541 = vmatpush.msra.mxu0 0.0
    %542 = vmatpush.msra.mxu0 0.0
    %543 = vmatpush.msra.mxu0 0.0
    %544 = vmatpush.msra.mxu0 0.0
    %545 = vmatpush.msra.mxu0 0.0
    %546 = vmatpush.msra.mxu0 0.0
    %547 = vmatpush.msra.mxu0 0.0
    %548 = vmatpush.msra.mxu0 0.0
    %549 = vmatpush.msra.mxu0 0.0
    %550 = vmatpush.msra.mxu0 0.0
    %551 = vmatpush.msra.mxu0 0.0
    %552 = vmatpush.msra.mxu0 0.0
    %553 = vmatpush.msra.mxu0 0.0
    %554 = vmatpush.msra.mxu0 0.0
    %555 = vmatpush.msra.mxu0 0.0
    %556 = vmatpush.msra.mxu0 %v534
    %557 = vmatmul.f32.gmra.mxu0 %v539
    %v558 = vpop.f32.mrf.mxu0
    %v559 = vadd.f32 0.0, %v558
    %560 = vdwg.mxu0
    %561 = vmatpush.msra.mxu0 0.0
    %562 = vmatpush.msra.mxu0 0.0
    %563 = vmatpush.msra.mxu0 0.0
    %564 = vmatpush.msra.mxu0 0.0
    %565 = vmatpush.msra.mxu0 0.0
    %566 = vmatpush.msra.mxu0 0.0
    %567 = vmatpush.msra.mxu0 0.0
    %568 = vmatpush.msra.mxu0 0.0
    %569 = vmatpush.msra.mxu0 0.0
    %570 = vmatpush.msra.mxu0 0.0
    %571 = vmatpush.msra.mxu0 0.0
    %572 = vmatpush.msra.mxu0 0.0
    %573 = vmatpush.msra.mxu0 0.0
    %574 = vmatpush.msra.mxu0 0.0
    %575 = vmatpush.msra.mxu0 0.0
    %576 = vmatpush.msra.mxu0 %v535
    %577 = vmatmul.f32.gmra.mxu0 %v539
    %v578 = vpop.f32.mrf.mxu0
    %v579 = vadd.f32 0.0, %v578
    %580 = vdwg.mxu0
    %v581 = vadd.f32 %v525, %v559
    %v582 = vadd.f32 %v526, %v579
    %583 = vrot.lane.b32.xlu0 %v146, 111
    %v584 = vpop.permute.xlu0 %583
    %585 = vrot.lane.b32.xlu0 %v147, 111
    %v586 = vpop.permute.xlu0 %585
    %vm587 = vcmp.lt.s32.totalorder %v28, 111
    %v588 = vsel %vm587, %v584, %v586
    %v589 = vsel %vm587, %v586, %v584
    %v590 = vmul.f32 %v588, %v80
    %v591 = vmul.f32 %v589, %v81
    %s592 = scalar_lea.vmem %s3, 64
    %v593 = vld [vmem:[%s592] sm:$0xff]
    %v595 = vsel %vm160, %v593, 0
    %597 = vmatpush.msra.mxu0 0.0
    %598 = vmatpush.msra.mxu0 0.0
    %599 = vmatpush.msra.mxu0 0.0
    %600 = vmatpush.msra.mxu0 0.0
    %601 = vmatpush.msra.mxu0 0.0
    %602 = vmatpush.msra.mxu0 0.0
    %603 = vmatpush.msra.mxu0 0.0
    %604 = vmatpush.msra.mxu0 0.0
    %605 = vmatpush.msra.mxu0 0.0
    %606 = vmatpush.msra.mxu0 0.0
    %607 = vmatpush.msra.mxu0 0.0
    %608 = vmatpush.msra.mxu0 0.0
    %609 = vmatpush.msra.mxu0 0.0
    %610 = vmatpush.msra.mxu0 0.0
    %611 = vmatpush.msra.mxu0 0.0
    %612 = vmatpush.msra.mxu0 %v590
    %613 = vmatmul.f32.gmra.mxu0 %v595
    %v614 = vpop.f32.mrf.mxu0
    %v615 = vadd.f32 0.0, %v614
    %616 = vdwg.mxu0
    %617 = vmatpush.msra.mxu0 0.0
    %618 = vmatpush.msra.mxu0 0.0
    %619 = vmatpush.msra.mxu0 0.0
    %620 = vmatpush.msra.mxu0 0.0
    %621 = vmatpush.msra.mxu0 0.0
    %622 = vmatpush.msra.mxu0 0.0
    %623 = vmatpush.msra.mxu0 0.0
    %624 = vmatpush.msra.mxu0 0.0
    %625 = vmatpush.msra.mxu0 0.0
    %626 = vmatpush.msra.mxu0 0.0
    %627 = vmatpush.msra.mxu0 0.0
    %628 = vmatpush.msra.mxu0 0.0
    %629 = vmatpush.msra.mxu0 0.0
    %630 = vmatpush.msra.mxu0 0.0
    %631 = vmatpush.msra.mxu0 0.0
    %632 = vmatpush.msra.mxu0 %v591
    %633 = vmatmul.f32.gmra.mxu0 %v595
    %v634 = vpop.f32.mrf.mxu0
    %v635 = vadd.f32 0.0, %v634
    %636 = vdwg.mxu0
    %v637 = vadd.f32 %v581, %v615
    %v638 = vadd.f32 %v582, %v635
    %640 = vset.pattern.permute.xlu0 0
    %641 = vperm.xlu0 %640, %v84
    %v642 = vpop.permute.xlu0 %641
    %v644 = vadd.f32 %v637, %v642
    %v645 = vadd.f32 %v638, %v642
    %v646 = vmax.f32 %v644, 0.0
    %v647 = vmax.f32 %v645, 0.0
    %649 = vset.pattern.permute.xlu0 0
    %650 = vperm.xlu0 %649, %v86
    %v651 = vpop.permute.xlu0 %650
    %v654 = vsel %vm160, %v85, 0
    %656 = vmatpush.msra.mxu0 0.0
    %657 = vmatpush.msra.mxu0 0.0
    %658 = vmatpush.msra.mxu0 0.0
    %659 = vmatpush.msra.mxu0 0.0
    %660 = vmatpush.msra.mxu0 0.0
    %661 = vmatpush.msra.mxu0 0.0
    %662 = vmatpush.msra.mxu0 0.0
    %663 = vmatpush.msra.mxu0 0.0
    %664 = vmatpush.msra.mxu0 0.0
    %665 = vmatpush.msra.mxu0 0.0
    %666 = vmatpush.msra.mxu0 0.0
    %667 = vmatpush.msra.mxu0 0.0
    %668 = vmatpush.msra.mxu0 0.0
    %669 = vmatpush.msra.mxu0 0.0
    %670 = vmatpush.msra.mxu0 0.0
    %671 = vmatpush.msra.mxu0 %v646
    %672 = vmatmul.f32.gmra.mxu0 %v654
    %v673 = vpop.f32.mrf.mxu0
    %v674 = vadd.f32 %v651, %v673
    %675 = vdwg.mxu0
    %676 = vmatpush.msra.mxu0 0.0
    %677 = vmatpush.msra.mxu0 0.0
    %678 = vmatpush.msra.mxu0 0.0
    %679 = vmatpush.msra.mxu0 0.0
    %680 = vmatpush.msra.mxu0 0.0
    %681 = vmatpush.msra.mxu0 0.0
    %682 = vmatpush.msra.mxu0 0.0
    %683 = vmatpush.msra.mxu0 0.0
    %684 = vmatpush.msra.mxu0 0.0
    %685 = vmatpush.msra.mxu0 0.0
    %686 = vmatpush.msra.mxu0 0.0
    %687 = vmatpush.msra.mxu0 0.0
    %688 = vmatpush.msra.mxu0 0.0
    %689 = vmatpush.msra.mxu0 0.0
    %690 = vmatpush.msra.mxu0 0.0
    %691 = vmatpush.msra.mxu0 %v647
    %692 = vmatmul.f32.gmra.mxu0 %v654
    %v693 = vpop.f32.mrf.mxu0
    %v694 = vadd.f32 %v651, %v693
    %695 = vdwg.mxu0
    %696 = vst [vmem:[#allocation1] ss:$2 sm:$0xff] %v87
    %v697 = vld.sshfl [vmem:[#allocation1] sm:$0xff pattern:$0x75316420]
    %v698 = vld.sshfl [vmem:[#allocation1 + $0x8] sm:$0xff pattern:$0x75316420]
    %v701 = vadd.f32 %v674, %v697
    %v702 = vadd.f32 %v694, %v698
    %v703 = vmax.f32 %v701, 0.0
    %v704 = vmax.f32 %v702, 0.0
    %v705 = vmul.f32 %v703, 0.5
    %v706 = vmul.f32 %v704, 0.5
    %v707 = vtanh.pop %v705
    %v708 = vtanh.pop %v706
    %v709 = vmul.f32 %v707, 0.5
    %v710 = vmul.f32 %v708, 0.5
    %v711 = vadd.f32 %v709, 0.5
    %v712 = vadd.f32 %v710, 0.5
    %v715 = vrot.slane %v712, 4
    %v716 = vsel %vm101, %v711, %v715
    %v718 = vmul.f32 %v87, %v716
    %719 = vst [vmem:[#allocation2] sm:$0xff] %v718
    %s720 = scalar_lea.vmem %s0, 8
    %v721 = vld [vmem:[%s720] sm:$0xff]
    %723 = vst [vmem:[#allocation1] ss:$2 sm:$0xff] %v721
    %v724 = vld.sshfl [vmem:[#allocation1] sm:$0xff pattern:$0x75316420]
    %v725 = vld.sshfl [vmem:[#allocation1 + $0x8] sm:$0xff pattern:$0x75316420]
    %v726 = vsel %vm101, %v724, 0
    %v728 = vsel %vm101, %v725, 0
    %730 = vmatpush.msra.mxu0 0.0
    %731 = vmatpush.msra.mxu0 0.0
    %732 = vmatpush.msra.mxu0 0.0
    %733 = vmatpush.msra.mxu0 0.0
    %734 = vmatpush.msra.mxu0 0.0
    %735 = vmatpush.msra.mxu0 0.0
    %736 = vmatpush.msra.mxu0 0.0
    %737 = vmatpush.msra.mxu0 0.0
    %738 = vmatpush.msra.mxu0 0.0
    %739 = vmatpush.msra.mxu0 0.0
    %740 = vmatpush.msra.mxu0 0.0
    %741 = vmatpush.msra.mxu0 0.0
    %742 = vmatpush.msra.mxu0 0.0
    %743 = vmatpush.msra.mxu0 0.0
    %744 = vmatpush.msra.mxu0 0.0
    %745 = vmatpush.msra.mxu0 %v726
    %746 = vmatmul.f32.gmra.mxu0 %v99
    %v747 = vpop.f32.mrf.mxu0
    %v748 = vadd.f32 %v91, %v747
    %749 = vdwg.mxu0
    %750 = vmatpush.msra.mxu0 0.0
    %751 = vmatpush.msra.mxu0 0.0
    %752 = vmatpush.msra.mxu0 0.0
    %753 = vmatpush.msra.mxu0 0.0
    %754 = vmatpush.msra.mxu0 0.0
    %755 = vmatpush.msra.mxu0 0.0
    %756 = vmatpush.msra.mxu0 0.0
    %757 = vmatpush.msra.mxu0 0.0
    %758 = vmatpush.msra.mxu0 0.0
    %759 = vmatpush.msra.mxu0 0.0
    %760 = vmatpush.msra.mxu0 0.0
    %761 = vmatpush.msra.mxu0 0.0
    %762 = vmatpush.msra.mxu0 0.0
    %763 = vmatpush.msra.mxu0 0.0
    %764 = vmatpush.msra.mxu0 0.0
    %765 = vmatpush.msra.mxu0 %v728
    %766 = vmatmul.f32.gmra.mxu0 %v99
    %v767 = vpop.f32.mrf.mxu0
    %v768 = vadd.f32 %v91, %v767
    %769 = vdwg.mxu0
    %v770 = vmax.f32 %v748, 0.0
    %v771 = vmax.f32 %v768, 0.0
    %v772 = vld [vmem:[%s148] sm:$0xff]
    %773 = vrot.lane.b32.xlu0 %v770, 17
    %v774 = vpop.permute.xlu0 %773
    %775 = vrot.lane.b32.xlu0 %v771, 17
    %v776 = vpop.permute.xlu0 %775
    %v777 = vsel %vm154, %v774, %v776
    %v778 = vsel %vm154, %v776, %v774
    %v779 = vmul.f32 %v778, %v42
    %v780 = vmul.f32 %v777, %v43
    %v781 = vld [vmem:[%s3] sm:$0xff]
    %v783 = vsel %vm160, %v781, 0
    %785 = vmatpush.msra.mxu0 0.0
    %786 = vmatpush.msra.mxu0 0.0
    %787 = vmatpush.msra.mxu0 0.0
    %788 = vmatpush.msra.mxu0 0.0
    %789 = vmatpush.msra.mxu0 0.0
    %790 = vmatpush.msra.mxu0 0.0
    %791 = vmatpush.msra.mxu0 0.0
    %792 = vmatpush.msra.mxu0 0.0
    %793 = vmatpush.msra.mxu0 0.0
    %794 = vmatpush.msra.mxu0 0.0
    %795 = vmatpush.msra.mxu0 0.0
    %796 = vmatpush.msra.mxu0 0.0
    %797 = vmatpush.msra.mxu0 0.0
    %798 = vmatpush.msra.mxu0 0.0
    %799 = vmatpush.msra.mxu0 0.0
    %800 = vmatpush.msra.mxu0 %v779
    %801 = vmatmul.f32.gmra.mxu0 %v783
    %v802 = vpop.f32.mrf.mxu0
    %v803 = vadd.f32 0.0, %v802
    %804 = vdwg.mxu0
    %805 = vmatpush.msra.mxu0 0.0
    %806 = vmatpush.msra.mxu0 0.0
    %807 = vmatpush.msra.mxu0 0.0
    %808 = vmatpush.msra.mxu0 0.0
    %809 = vmatpush.msra.mxu0 0.0
    %810 = vmatpush.msra.mxu0 0.0
    %811 = vmatpush.msra.mxu0 0.0
    %812 = vmatpush.msra.mxu0 0.0
    %813 = vmatpush.msra.mxu0 0.0
    %814 = vmatpush.msra.mxu0 0.0
    %815 = vmatpush.msra.mxu0 0.0
    %816 = vmatpush.msra.mxu0 0.0
    %817 = vmatpush.msra.mxu0 0.0
    %818 = vmatpush.msra.mxu0 0.0
    %819 = vmatpush.msra.mxu0 0.0
    %820 = vmatpush.msra.mxu0 %v780
    %821 = vmatmul.f32.gmra.mxu0 %v783
    %v822 = vpop.f32.mrf.mxu0
    %v823 = vadd.f32 0.0, %v822
    %824 = vdwg.mxu0
    %v826 = vsel %vm160, %v772, 0
    %828 = vmatpush.msra.mxu0 0.0
    %829 = vmatpush.msra.mxu0 0.0
    %830 = vmatpush.msra.mxu0 0.0
    %831 = vmatpush.msra.mxu0 0.0
    %832 = vmatpush.msra.mxu0 0.0
    %833 = vmatpush.msra.mxu0 0.0
    %834 = vmatpush.msra.mxu0 0.0
    %835 = vmatpush.msra.mxu0 0.0
    %836 = vmatpush.msra.mxu0 0.0
    %837 = vmatpush.msra.mxu0 0.0
    %838 = vmatpush.msra.mxu0 0.0
    %839 = vmatpush.msra.mxu0 0.0
    %840 = vmatpush.msra.mxu0 0.0
    %841 = vmatpush.msra.mxu0 0.0
    %842 = vmatpush.msra.mxu0 0.0
    %843 = vmatpush.msra.mxu0 %v770
    %844 = vmatmul.f32.gmra.mxu0 %v826
    %v845 = vpop.f32.mrf.mxu0
    %v846 = vadd.f32 %v803, %v845
    %847 = vdwg.mxu0
    %848 = vmatpush.msra.mxu0 0.0
    %849 = vmatpush.msra.mxu0 0.0
    %850 = vmatpush.msra.mxu0 0.0
    %851 = vmatpush.msra.mxu0 0.0
    %852 = vmatpush.msra.mxu0 0.0
    %853 = vmatpush.msra.mxu0 0.0
    %854 = vmatpush.msra.mxu0 0.0
    %855 = vmatpush.msra.mxu0 0.0
    %856 = vmatpush.msra.mxu0 0.0
    %857 = vmatpush.msra.mxu0 0.0
    %858 = vmatpush.msra.mxu0 0.0
    %859 = vmatpush.msra.mxu0 0.0
    %860 = vmatpush.msra.mxu0 0.0
    %861 = vmatpush.msra.mxu0 0.0
    %862 = vmatpush.msra.mxu0 0.0
    %863 = vmatpush.msra.mxu0 %v771
    %864 = vmatmul.f32.gmra.mxu0 %v826
    %v865 = vpop.f32.mrf.mxu0
    %v866 = vadd.f32 %v823, %v865
    %867 = vdwg.mxu0
    %868 = vrot.lane.b32.xlu0 %v770, 16
    %v869 = vpop.permute.xlu0 %868
    %870 = vrot.lane.b32.xlu0 %v771, 16
    %v871 = vpop.permute.xlu0 %870
    %v872 = vsel %vm251, %v869, %v871
    %v873 = vsel %vm251, %v871, %v869
    %v874 = vmul.f32 %v873, %v46
    %v875 = vmul.f32 %v872, %v47
    %v876 = vld [vmem:[%s256] sm:$0xff]
    %v878 = vsel %vm160, %v876, 0
    %880 = vmatpush.msra.mxu0 0.0
    %881 = vmatpush.msra.mxu0 0.0
    %882 = vmatpush.msra.mxu0 0.0
    %883 = vmatpush.msra.mxu0 0.0
    %884 = vmatpush.msra.mxu0 0.0
    %885 = vmatpush.msra.mxu0 0.0
    %886 = vmatpush.msra.mxu0 0.0
    %887 = vmatpush.msra.mxu0 0.0
    %888 = vmatpush.msra.mxu0 0.0
    %889 = vmatpush.msra.mxu0 0.0
    %890 = vmatpush.msra.mxu0 0.0
    %891 = vmatpush.msra.mxu0 0.0
    %892 = vmatpush.msra.mxu0 0.0
    %893 = vmatpush.msra.mxu0 0.0
    %894 = vmatpush.msra.mxu0 0.0
    %895 = vmatpush.msra.mxu0 %v874
    %896 = vmatmul.f32.gmra.mxu0 %v878
    %v897 = vpop.f32.mrf.mxu0
    %v898 = vadd.f32 0.0, %v897
    %899 = vdwg.mxu0
    %900 = vmatpush.msra.mxu0 0.0
    %901 = vmatpush.msra.mxu0 0.0
    %902 = vmatpush.msra.mxu0 0.0
    %903 = vmatpush.msra.mxu0 0.0
    %904 = vmatpush.msra.mxu0 0.0
    %905 = vmatpush.msra.mxu0 0.0
    %906 = vmatpush.msra.mxu0 0.0
    %907 = vmatpush.msra.mxu0 0.0
    %908 = vmatpush.msra.mxu0 0.0
    %909 = vmatpush.msra.mxu0 0.0
    %910 = vmatpush.msra.mxu0 0.0
    %911 = vmatpush.msra.mxu0 0.0
    %912 = vmatpush.msra.mxu0 0.0
    %913 = vmatpush.msra.mxu0 0.0
    %914 = vmatpush.msra.mxu0 0.0
    %915 = vmatpush.msra.mxu0 %v875
    %916 = vmatmul.f32.gmra.mxu0 %v878
    %v917 = vpop.f32.mrf.mxu0
    %v918 = vadd.f32 0.0, %v917
    %919 = vdwg.mxu0
    %v920 = vadd.f32 %v846, %v898
    %v921 = vadd.f32 %v866, %v918
    %922 = vrot.lane.b32.xlu0 %v770, 15
    %v923 = vpop.permute.xlu0 %922
    %924 = vrot.lane.b32.xlu0 %v771, 15
    %v925 = vpop.permute.xlu0 %924
    %v926 = vsel %vm307, %v923, %v925
    %v927 = vsel %vm307, %v925, %v923
    %v928 = vmul.f32 %v927, %v54
    %v929 = vmul.f32 %v926, %v55
    %v930 = vld [vmem:[%s312] sm:$0xff]
    %v932 = vsel %vm160, %v930, 0
    %934 = vmatpush.msra.mxu0 0.0
    %935 = vmatpush.msra.mxu0 0.0
    %936 = vmatpush.msra.mxu0 0.0
    %937 = vmatpush.msra.mxu0 0.0
    %938 = vmatpush.msra.mxu0 0.0
    %939 = vmatpush.msra.mxu0 0.0
    %940 = vmatpush.msra.mxu0 0.0
    %941 = vmatpush.msra.mxu0 0.0
    %942 = vmatpush.msra.mxu0 0.0
    %943 = vmatpush.msra.mxu0 0.0
    %944 = vmatpush.msra.mxu0 0.0
    %945 = vmatpush.msra.mxu0 0.0
    %946 = vmatpush.msra.mxu0 0.0
    %947 = vmatpush.msra.mxu0 0.0
    %948 = vmatpush.msra.mxu0 0.0
    %949 = vmatpush.msra.mxu0 %v928
    %950 = vmatmul.f32.gmra.mxu0 %v932
    %v951 = vpop.f32.mrf.mxu0
    %v952 = vadd.f32 0.0, %v951
    %953 = vdwg.mxu0
    %954 = vmatpush.msra.mxu0 0.0
    %955 = vmatpush.msra.mxu0 0.0
    %956 = vmatpush.msra.mxu0 0.0
    %957 = vmatpush.msra.mxu0 0.0
    %958 = vmatpush.msra.mxu0 0.0
    %959 = vmatpush.msra.mxu0 0.0
    %960 = vmatpush.msra.mxu0 0.0
    %961 = vmatpush.msra.mxu0 0.0
    %962 = vmatpush.msra.mxu0 0.0
    %963 = vmatpush.msra.mxu0 0.0
    %964 = vmatpush.msra.mxu0 0.0
    %965 = vmatpush.msra.mxu0 0.0
    %966 = vmatpush.msra.mxu0 0.0
    %967 = vmatpush.msra.mxu0 0.0
    %968 = vmatpush.msra.mxu0 0.0
    %969 = vmatpush.msra.mxu0 %v929
    %970 = vmatmul.f32.gmra.mxu0 %v932
    %v971 = vpop.f32.mrf.mxu0
    %v972 = vadd.f32 0.0, %v971
    %973 = vdwg.mxu0
    %v974 = vadd.f32 %v920, %v952
    %v975 = vadd.f32 %v921, %v972
    %976 = vrot.lane.b32.xlu0 %v770, 1
    %v977 = vpop.permute.xlu0 %976
    %978 = vrot.lane.b32.xlu0 %v771, 1
    %v979 = vpop.permute.xlu0 %978
    %v980 = vsel %vm363, %v977, %v979
    %v981 = vsel %vm363, %v979, %v977
    %v982 = vmul.f32 %v981, %v58
    %v983 = vmul.f32 %v980, %v59
    %v984 = vld [vmem:[%s368] sm:$0xff]
    %v986 = vsel %vm160, %v984, 0
    %988 = vmatpush.msra.mxu0 0.0
    %989 = vmatpush.msra.mxu0 0.0
    %990 = vmatpush.msra.mxu0 0.0
    %991 = vmatpush.msra.mxu0 0.0
    %992 = vmatpush.msra.mxu0 0.0
    %993 = vmatpush.msra.mxu0 0.0
    %994 = vmatpush.msra.mxu0 0.0
    %995 = vmatpush.msra.mxu0 0.0
    %996 = vmatpush.msra.mxu0 0.0
    %997 = vmatpush.msra.mxu0 0.0
    %998 = vmatpush.msra.mxu0 0.0
    %999 = vmatpush.msra.mxu0 0.0
    %1000 = vmatpush.msra.mxu0 0.0
    %1001 = vmatpush.msra.mxu0 0.0
    %1002 = vmatpush.msra.mxu0 0.0
    %1003 = vmatpush.msra.mxu0 %v982
    %1004 = vmatmul.f32.gmra.mxu0 %v986
    %v1005 = vpop.f32.mrf.mxu0
    %v1006 = vadd.f32 0.0, %v1005
    %1007 = vdwg.mxu0
    %1008 = vmatpush.msra.mxu0 0.0
    %1009 = vmatpush.msra.mxu0 0.0
    %1010 = vmatpush.msra.mxu0 0.0
    %1011 = vmatpush.msra.mxu0 0.0
    %1012 = vmatpush.msra.mxu0 0.0
    %1013 = vmatpush.msra.mxu0 0.0
    %1014 = vmatpush.msra.mxu0 0.0
    %1015 = vmatpush.msra.mxu0 0.0
    %1016 = vmatpush.msra.mxu0 0.0
    %1017 = vmatpush.msra.mxu0 0.0
    %1018 = vmatpush.msra.mxu0 0.0
    %1019 = vmatpush.msra.mxu0 0.0
    %1020 = vmatpush.msra.mxu0 0.0
    %1021 = vmatpush.msra.mxu0 0.0
    %1022 = vmatpush.msra.mxu0 0.0
    %1023 = vmatpush.msra.mxu0 %v983
    %1024 = vmatmul.f32.gmra.mxu0 %v986
    %v1025 = vpop.f32.mrf.mxu0
    %v1026 = vadd.f32 0.0, %v1025
    %1027 = vdwg.mxu0
    %v1028 = vadd.f32 %v974, %v1006
    %v1029 = vadd.f32 %v975, %v1026
    %1030 = vrot.lane.b32.xlu0 %v770, 127
    %v1031 = vpop.permute.xlu0 %1030
    %1032 = vrot.lane.b32.xlu0 %v771, 127
    %v1033 = vpop.permute.xlu0 %1032
    %v1034 = vsel %vm419, %v1031, %v1033
    %v1035 = vsel %vm419, %v1033, %v1031
    %v1036 = vmul.f32 %v1034, %v62
    %v1037 = vmul.f32 %v1035, %v63
    %v1038 = vld [vmem:[%s424] sm:$0xff]
    %v1040 = vsel %vm160, %v1038, 0
    %1042 = vmatpush.msra.mxu0 0.0
    %1043 = vmatpush.msra.mxu0 0.0
    %1044 = vmatpush.msra.mxu0 0.0
    %1045 = vmatpush.msra.mxu0 0.0
    %1046 = vmatpush.msra.mxu0 0.0
    %1047 = vmatpush.msra.mxu0 0.0
    %1048 = vmatpush.msra.mxu0 0.0
    %1049 = vmatpush.msra.mxu0 0.0
    %1050 = vmatpush.msra.mxu0 0.0
    %1051 = vmatpush.msra.mxu0 0.0
    %1052 = vmatpush.msra.mxu0 0.0
    %1053 = vmatpush.msra.mxu0 0.0
    %1054 = vmatpush.msra.mxu0 0.0
    %1055 = vmatpush.msra.mxu0 0.0
    %1056 = vmatpush.msra.mxu0 0.0
    %1057 = vmatpush.msra.mxu0 %v1036
    %1058 = vmatmul.f32.gmra.mxu0 %v1040
    %v1059 = vpop.f32.mrf.mxu0
    %v1060 = vadd.f32 0.0, %v1059
    %1061 = vdwg.mxu0
    %1062 = vmatpush.msra.mxu0 0.0
    %1063 = vmatpush.msra.mxu0 0.0
    %1064 = vmatpush.msra.mxu0 0.0
    %1065 = vmatpush.msra.mxu0 0.0
    %1066 = vmatpush.msra.mxu0 0.0
    %1067 = vmatpush.msra.mxu0 0.0
    %1068 = vmatpush.msra.mxu0 0.0
    %1069 = vmatpush.msra.mxu0 0.0
    %1070 = vmatpush.msra.mxu0 0.0
    %1071 = vmatpush.msra.mxu0 0.0
    %1072 = vmatpush.msra.mxu0 0.0
    %1073 = vmatpush.msra.mxu0 0.0
    %1074 = vmatpush.msra.mxu0 0.0
    %1075 = vmatpush.msra.mxu0 0.0
    %1076 = vmatpush.msra.mxu0 0.0
    %1077 = vmatpush.msra.mxu0 %v1037
    %1078 = vmatmul.f32.gmra.mxu0 %v1040
    %v1079 = vpop.f32.mrf.mxu0
    %v1080 = vadd.f32 0.0, %v1079
    %1081 = vdwg.mxu0
    %v1082 = vadd.f32 %v1028, %v1060
    %v1083 = vadd.f32 %v1029, %v1080
    %1084 = vrot.lane.b32.xlu0 %v770, 113
    %v1085 = vpop.permute.xlu0 %1084
    %1086 = vrot.lane.b32.xlu0 %v771, 113
    %v1087 = vpop.permute.xlu0 %1086
    %v1088 = vsel %vm475, %v1085, %v1087
    %v1089 = vsel %vm475, %v1087, %v1085
    %v1090 = vmul.f32 %v1088, %v70
    %v1091 = vmul.f32 %v1089, %v71
    %v1092 = vld [vmem:[%s480] sm:$0xff]
    %v1094 = vsel %vm160, %v1092, 0
    %1096 = vmatpush.msra.mxu0 0.0
    %1097 = vmatpush.msra.mxu0 0.0
    %1098 = vmatpush.msra.mxu0 0.0
    %1099 = vmatpush.msra.mxu0 0.0
    %1100 = vmatpush.msra.mxu0 0.0
    %1101 = vmatpush.msra.mxu0 0.0
    %1102 = vmatpush.msra.mxu0 0.0
    %1103 = vmatpush.msra.mxu0 0.0
    %1104 = vmatpush.msra.mxu0 0.0
    %1105 = vmatpush.msra.mxu0 0.0
    %1106 = vmatpush.msra.mxu0 0.0
    %1107 = vmatpush.msra.mxu0 0.0
    %1108 = vmatpush.msra.mxu0 0.0
    %1109 = vmatpush.msra.mxu0 0.0
    %1110 = vmatpush.msra.mxu0 0.0
    %1111 = vmatpush.msra.mxu0 %v1090
    %1112 = vmatmul.f32.gmra.mxu0 %v1094
    %v1113 = vpop.f32.mrf.mxu0
    %v1114 = vadd.f32 0.0, %v1113
    %1115 = vdwg.mxu0
    %1116 = vmatpush.msra.mxu0 0.0
    %1117 = vmatpush.msra.mxu0 0.0
    %1118 = vmatpush.msra.mxu0 0.0
    %1119 = vmatpush.msra.mxu0 0.0
    %1120 = vmatpush.msra.mxu0 0.0
    %1121 = vmatpush.msra.mxu0 0.0
    %1122 = vmatpush.msra.mxu0 0.0
    %1123 = vmatpush.msra.mxu0 0.0
    %1124 = vmatpush.msra.mxu0 0.0
    %1125 = vmatpush.msra.mxu0 0.0
    %1126 = vmatpush.msra.mxu0 0.0
    %1127 = vmatpush.msra.mxu0 0.0
    %1128 = vmatpush.msra.mxu0 0.0
    %1129 = vmatpush.msra.mxu0 0.0
    %1130 = vmatpush.msra.mxu0 0.0
    %1131 = vmatpush.msra.mxu0 %v1091
    %1132 = vmatmul.f32.gmra.mxu0 %v1094
    %v1133 = vpop.f32.mrf.mxu0
    %v1134 = vadd.f32 0.0, %v1133
    %1135 = vdwg.mxu0
    %v1136 = vadd.f32 %v1082, %v1114
    %v1137 = vadd.f32 %v1083, %v1134
    %1138 = vrot.lane.b32.xlu0 %v770, 112
    %v1139 = vpop.permute.xlu0 %1138
    %1140 = vrot.lane.b32.xlu0 %v771, 112
    %v1141 = vpop.permute.xlu0 %1140
    %v1142 = vsel %vm531, %v1139, %v1141
    %v1143 = vsel %vm531, %v1141, %v1139
    %v1144 = vmul.f32 %v1142, %v74
    %v1145 = vmul.f32 %v1143, %v75
    %v1146 = vld [vmem:[%s536] sm:$0xff]
    %v1148 = vsel %vm160, %v1146, 0
    %1150 = vmatpush.msra.mxu0 0.0
    %1151 = vmatpush.msra.mxu0 0.0
    %1152 = vmatpush.msra.mxu0 0.0
    %1153 = vmatpush.msra.mxu0 0.0
    %1154 = vmatpush.msra.mxu0 0.0
    %1155 = vmatpush.msra.mxu0 0.0
    %1156 = vmatpush.msra.mxu0 0.0
    %1157 = vmatpush.msra.mxu0 0.0
    %1158 = vmatpush.msra.mxu0 0.0
    %1159 = vmatpush.msra.mxu0 0.0
    %1160 = vmatpush.msra.mxu0 0.0
    %1161 = vmatpush.msra.mxu0 0.0
    %1162 = vmatpush.msra.mxu0 0.0
    %1163 = vmatpush.msra.mxu0 0.0
    %1164 = vmatpush.msra.mxu0 0.0
    %1165 = vmatpush.msra.mxu0 %v1144
    %1166 = vmatmul.f32.gmra.mxu0 %v1148
    %v1167 = vpop.f32.mrf.mxu0
    %v1168 = vadd.f32 0.0, %v1167
    %1169 = vdwg.mxu0
    %1170 = vmatpush.msra.mxu0 0.0
    %1171 = vmatpush.msra.mxu0 0.0
    %1172 = vmatpush.msra.mxu0 0.0
    %1173 = vmatpush.msra.mxu0 0.0
    %1174 = vmatpush.msra.mxu0 0.0
    %1175 = vmatpush.msra.mxu0 0.0
    %1176 = vmatpush.msra.mxu0 0.0
    %1177 = vmatpush.msra.mxu0 0.0
    %1178 = vmatpush.msra.mxu0 0.0
    %1179 = vmatpush.msra.mxu0 0.0
    %1180 = vmatpush.msra.mxu0 0.0
    %1181 = vmatpush.msra.mxu0 0.0
    %1182 = vmatpush.msra.mxu0 0.0
    %1183 = vmatpush.msra.mxu0 0.0
    %1184 = vmatpush.msra.mxu0 0.0
    %1185 = vmatpush.msra.mxu0 %v1145
    %1186 = vmatmul.f32.gmra.mxu0 %v1148
    %v1187 = vpop.f32.mrf.mxu0
    %v1188 = vadd.f32 0.0, %v1187
    %1189 = vdwg.mxu0
    %v1190 = vadd.f32 %v1136, %v1168
    %v1191 = vadd.f32 %v1137, %v1188
    %1192 = vrot.lane.b32.xlu0 %v770, 111
    %v1193 = vpop.permute.xlu0 %1192
    %1194 = vrot.lane.b32.xlu0 %v771, 111
    %v1195 = vpop.permute.xlu0 %1194
    %v1196 = vsel %vm587, %v1193, %v1195
    %v1197 = vsel %vm587, %v1195, %v1193
    %v1198 = vmul.f32 %v1196, %v80
    %v1199 = vmul.f32 %v1197, %v81
    %v1200 = vld [vmem:[%s592] sm:$0xff]
    %v1202 = vsel %vm160, %v1200, 0
    %1204 = vmatpush.msra.mxu0 0.0
    %1205 = vmatpush.msra.mxu0 0.0
    %1206 = vmatpush.msra.mxu0 0.0
    %1207 = vmatpush.msra.mxu0 0.0
    %1208 = vmatpush.msra.mxu0 0.0
    %1209 = vmatpush.msra.mxu0 0.0
    %1210 = vmatpush.msra.mxu0 0.0
    %1211 = vmatpush.msra.mxu0 0.0
    %1212 = vmatpush.msra.mxu0 0.0
    %1213 = vmatpush.msra.mxu0 0.0
    %1214 = vmatpush.msra.mxu0 0.0
    %1215 = vmatpush.msra.mxu0 0.0
    %1216 = vmatpush.msra.mxu0 0.0
    %1217 = vmatpush.msra.mxu0 0.0
    %1218 = vmatpush.msra.mxu0 0.0
    %1219 = vmatpush.msra.mxu0 %v1198
    %1220 = vmatmul.f32.gmra.mxu0 %v1202
    %v1221 = vpop.f32.mrf.mxu0
    %v1222 = vadd.f32 0.0, %v1221
    %1223 = vdwg.mxu0
    %1224 = vmatpush.msra.mxu0 0.0
    %1225 = vmatpush.msra.mxu0 0.0
    %1226 = vmatpush.msra.mxu0 0.0
    %1227 = vmatpush.msra.mxu0 0.0
    %1228 = vmatpush.msra.mxu0 0.0
    %1229 = vmatpush.msra.mxu0 0.0
    %1230 = vmatpush.msra.mxu0 0.0
    %1231 = vmatpush.msra.mxu0 0.0
    %1232 = vmatpush.msra.mxu0 0.0
    %1233 = vmatpush.msra.mxu0 0.0
    %1234 = vmatpush.msra.mxu0 0.0
    %1235 = vmatpush.msra.mxu0 0.0
    %1236 = vmatpush.msra.mxu0 0.0
    %1237 = vmatpush.msra.mxu0 0.0
    %1238 = vmatpush.msra.mxu0 0.0
    %1239 = vmatpush.msra.mxu0 %v1199
    %1240 = vmatmul.f32.gmra.mxu0 %v1202
    %v1241 = vpop.f32.mrf.mxu0
    %v1242 = vadd.f32 0.0, %v1241
    %1243 = vdwg.mxu0
    %v1244 = vadd.f32 %v1190, %v1222
    %v1245 = vadd.f32 %v1191, %v1242
    %v1246 = vadd.f32 %v1244, %v642
    %v1247 = vadd.f32 %v1245, %v642
    %v1248 = vmax.f32 %v1246, 0.0
    %v1249 = vmax.f32 %v1247, 0.0
    %1250 = vmatpush.msra.mxu0 0.0
    %1251 = vmatpush.msra.mxu0 0.0
    %1252 = vmatpush.msra.mxu0 0.0
    %1253 = vmatpush.msra.mxu0 0.0
    %1254 = vmatpush.msra.mxu0 0.0
    %1255 = vmatpush.msra.mxu0 0.0
    %1256 = vmatpush.msra.mxu0 0.0
    %1257 = vmatpush.msra.mxu0 0.0
    %1258 = vmatpush.msra.mxu0 0.0
    %1259 = vmatpush.msra.mxu0 0.0
    %1260 = vmatpush.msra.mxu0 0.0
    %1261 = vmatpush.msra.mxu0 0.0
    %1262 = vmatpush.msra.mxu0 0.0
    %1263 = vmatpush.msra.mxu0 0.0
    %1264 = vmatpush.msra.mxu0 0.0
    %1265 = vmatpush.msra.mxu0 %v1248
    %1266 = vmatmul.f32.gmra.mxu0 %v654
    %v1267 = vpop.f32.mrf.mxu0
    %v1268 = vadd.f32 %v651, %v1267
    %1269 = vdwg.mxu0
    %1270 = vmatpush.msra.mxu0 0.0
    %1271 = vmatpush.msra.mxu0 0.0
    %1272 = vmatpush.msra.mxu0 0.0
    %1273 = vmatpush.msra.mxu0 0.0
    %1274 = vmatpush.msra.mxu0 0.0
    %1275 = vmatpush.msra.mxu0 0.0
    %1276 = vmatpush.msra.mxu0 0.0
    %1277 = vmatpush.msra.mxu0 0.0
    %1278 = vmatpush.msra.mxu0 0.0
    %1279 = vmatpush.msra.mxu0 0.0
    %1280 = vmatpush.msra.mxu0 0.0
    %1281 = vmatpush.msra.mxu0 0.0
    %1282 = vmatpush.msra.mxu0 0.0
    %1283 = vmatpush.msra.mxu0 0.0
    %1284 = vmatpush.msra.mxu0 0.0
    %1285 = vmatpush.msra.mxu0 %v1249
    %1286 = vmatmul.f32.gmra.mxu0 %v654
    %v1287 = vpop.f32.mrf.mxu0
    %v1288 = vadd.f32 %v651, %v1287
    %1289 = vdwg.mxu0
    %1290 = vst [vmem:[#allocation1] ss:$2 sm:$0xff] %v721
    %v1291 = vld.sshfl [vmem:[#allocation1] sm:$0xff pattern:$0x75316420]
    %v1292 = vld.sshfl [vmem:[#allocation1 + $0x8] sm:$0xff pattern:$0x75316420]
    %v1295 = vadd.f32 %v1268, %v1291
    %v1296 = vadd.f32 %v1288, %v1292
    %v1297 = vmax.f32 %v1295, 0.0
    %v1298 = vmax.f32 %v1296, 0.0
    %v1299 = vmul.f32 %v1297, 0.5
    %v1300 = vmul.f32 %v1298, 0.5
    %v1301 = vtanh.pop %v1299
    %v1302 = vtanh.pop %v1300
    %v1303 = vmul.f32 %v1301, 0.5
    %v1304 = vmul.f32 %v1302, 0.5
    %v1305 = vadd.f32 %v1303, 0.5
    %v1306 = vadd.f32 %v1304, 0.5
    %v1309 = vrot.slane %v1306, 4
    %v1310 = vsel %vm101, %v1305, %v1309
    %v1312 = vmul.f32 %v721, %v1310
    %s1313 = scalar_lea.vmem [#allocation2], 8
    %1314 = vst [vmem:[%s1313] sm:$0xff] %v1312
    // Predicated region
    $region30: #{tpu_custom_call.1} parent=1 // pred_check
      _
    $region31: #{tpu_custom_call.1} parent=1 // pred_check_branch
      %1316 = sbr.rel (0) target = $region33
    $region32: #{tpu_custom_call.1} parent=1 // pred_region
      %1318 = vsyncadd [#allocation3], 0
      %s1319 = sshll.u32 [#allocation2], 4
      %s1320 = int_to_ptr.vmem [resolvable:$true] %s1319
      %s1321 = sshll.u32 %s7, 4
      %s1322 = int_to_ptr.hbm [resolvable:$true] %s1321
      %1327 = dma.vmem_to_hbm [thread:$0]  %s1320, 256, %s1322, [#allocation3], 128, 128, 8
    $region33: #{tpu_custom_call.1} parent=1 // pred_fallthru
      _
    // Predicated region
    $region34: #{tpu_custom_call.1} parent=1 // pred_check
      _
    $region35: #{tpu_custom_call.1} parent=1 // pred_check_branch
      %1329 = sbr.rel (0) target = $region37
    $region36: #{tpu_custom_call.1} parent=1 // pred_region
      %1331 = dma.done [#allocation3], 256
    $region37: #{tpu_custom_call.1} parent=1 // pred_fallthru
      _
    %1332 = vsyncpa [#allocation3], 1

</llo_original>
